<compile_context>
chip_gen: v6e
topology: v6e:2x2x1
jax: 0.10.0
libtpu: 0.0.40
codegen_flags: <defaults>
</compile_context>

<pallas_src>
import numpy as np
import jax
import jax.numpy as jnp
from jax.experimental import pallas as pl
from jax.experimental.pallas import tpu as pltpu

# ----------------------------- problem sizes ---------------------------------
B, C, H, W = 2, 4, 16, 16
D = C * H * W                  # 1024 flattened features
M = 3                          # number of ensemble members
F_CLS = 32                     # food classes
CU_CLS = 16                    # cuisine classes
N_NUTR = 8                     # nutrition values
K_TOT = F_CLS + CU_CLS + N_NUTR          # 56 valid columns per model
K_PAD = 64                               # densified per-model block (was 128)
N_FUSED = M * K_PAD                      # 192 fused matmul width
OUT_LANES = 128                          # packed lane-dense output width
N_SCAL = 8                               # metadata scalars packed at lanes 56..63
EPS = 1e-8


# --------------------------- fused ensemble kernel ----------------------------
def _fused_kernel(w_ref, t_ref, x_ref, wfull_ref, bfull_ref, out_ref):
    # w_ref:     (M,)         f32 SMEM   normalized ensemble weights
    # t_ref:     (2,)         f32 SMEM   [temperature_food, temperature_cuisine]
    # x_ref:     (B, D)       f32 VMEM   (cast to bf16 in-kernel)
    # wfull_ref: (D, N_FUSED) bf16 VMEM  densified fused weight slab
    # bfull_ref: (1, N_FUSED) f32 VMEM   fused bias
    # out_ref:   (B, OUT_LANES) f32 VMEM packed result (single full store)

    # single MXU pass for all models / all heads, f32 accumulation
    x_bf = x_ref[...].astype(jnp.bfloat16)
    acc = jnp.dot(x_bf, wfull_ref[...], preferred_element_type=jnp.float32)
    acc = acc + bfull_ref[...]                       # (B, N_FUSED) f32

    def softmax(logits):
        mx = jnp.max(logits, axis=1, keepdims=True)
        e = jnp.exp(logits - mx)
        s = jnp.sum(e, axis=1, keepdims=True)
        return e * pl.reciprocal(s, approx=True)     # EUP slot, otherwise idle

    def entropy(p):                                  # predictive entropy w/ clamp
        pc = jnp.clip(p, EPS, 1.0 - EPS)
        return -jnp.sum(pc * jnp.log(pc), axis=1, keepdims=True)   # (B, 1)

    inv_m = 1.0 / M

    # --- weighted ensemble combine on aligned 64-wide per-model blocks -------
    # Each block is laid out [food(32) | cuisine(16) | nutrition(8) | pad(8)],
    # so the weighted sum is already packed in lanes 0..55 (56..63 stay zero).
    ens64 = (w_ref[0] * acc[:, 0 * K_PAD:1 * K_PAD]
             + w_ref[1] * acc[:, 1 * K_PAD:2 * K_PAD]
             + w_ref[2] * acc[:, 2 * K_PAD:3 * K_PAD])              # (B, 64)

    # temperature scaling: food lanes / T_food, cuisine lanes / T_cuisine
    lane64 = jax.lax.broadcasted_iota(jnp.int32, (1, K_PAD), 1)
    temp_vec = jnp.where(lane64 < F_CLS, t_ref[0],
                         jnp.where(lane64 < F_CLS + CU_CLS, t_ref[1], 1.0))
    ens64 = ens64 / temp_vec

    # --- per-model uncertainty / confidence stats -----------------------------
    mean_pf = jnp.zeros((B, F_CLS), jnp.float32)
    mean_pc = jnp.zeros((B, CU_CLS), jnp.float32)
    mean_hf = jnp.zeros((B, 1), jnp.float32)
    mean_hc = jnp.zeros((B, 1), jnp.float32)
    nutr_list = []
    conf_list = []

    for m in range(M):                               # static unroll (M == 3)
        base = m * K_PAD
        food_m = acc[:, base:base + F_CLS]
        cuis_m = acc[:, base + F_CLS:base + F_CLS + CU_CLS]
        nutr_m = acc[:, base + F_CLS + CU_CLS:base + K_TOT]

        pf = softmax(food_m)                         # raw (un-scaled) logits, as in torch spec
        pc = softmax(cuis_m)
        mean_pf = mean_pf + pf * inv_m
        mean_pc = mean_pc + pc * inv_m
        mean_hf = mean_hf + entropy(pf) * inv_m
        mean_hc = mean_hc + entropy(pc) * inv_m

        nutr_list.append(nutr_m)
        # per-model confidence = batch mean of max food probability -> (1, 1)
        conf_list.append(jnp.mean(jnp.max(pf, axis=1, keepdims=True),
                                  axis=0, keepdims=True))

    # mutual information = H(mean_p) - mean_i H(p_i); batch means -> (1, 1)
    food_mi = entropy(mean_pf) - mean_hf                            # (B, 1)
    cuis_mi = entropy(mean_pc) - mean_hc                            # (B, 1)
    food_unc = jnp.mean(food_mi, axis=0, keepdims=True)             # (1, 1)
    cuis_unc = jnp.mean(cuis_mi, axis=0, keepdims=True)             # (1, 1)

    # two-pass unbiased variance over models (matches torch.var default ddof=1)
    n_mean = (nutr_list[0] + nutr_list[1] + nutr_list[2]) * inv_m
    var = jnp.zeros((B, N_NUTR), jnp.float32)
    for nm in nutr_list:
        d = nm - n_mean
        var = var + d * d
    var = var * (1.0 / (M - 1))
    nutr_var = jnp.mean(jnp.mean(var, axis=1, keepdims=True),
                        axis=0, keepdims=True)                      # (1, 1)

    # ensemble confidence (max of confidences) / prediction diversity (np.std, ddof=0)
    c0, c1, c2 = conf_list
    ens_conf = jnp.maximum(jnp.maximum(c0, c1), c2)
    c_mean = (c0 + c1 + c2) * inv_m
    c_var = ((c0 - c_mean) ** 2 + (c1 - c_mean) ** 2 + (c2 - c_mean) ** 2) * inv_m
    pred_div = jnp.sqrt(c_var)

    # --- register-side output assembly: scatter scalars into lanes 56..63 -----
    lane_b = jax.lax.broadcasted_iota(jnp.int32, (B, K_PAD), 1)
    scal_vals = (food_unc, cuis_unc, nutr_var, c0, c1, c2, ens_conf, pred_div)
    for i, v in enumerate(scal_vals):
        ens64 = jnp.where(lane_b == K_TOT + i,
                          jnp.broadcast_to(v, (B, K_PAD)), ens64)

    # single full-width unmasked store of the lane-dense packed slab
    out_ref[...] = jnp.concatenate(
        [ens64, jnp.zeros((B, OUT_LANES - K_PAD), jnp.float32)], axis=1)


def _run_fused(norm_weights, temps, x2d_f32, w_fused, b_fused):
    # No grid: single invocation, whole arrays resident in VMEM/SMEM,
    # no auto-pipeline double buffering.
    return pl.pallas_call(
        _fused_kernel,
        out_shape=jax.ShapeDtypeStruct((B, OUT_LANES), jnp.float32),
        in_specs=[
            pl.BlockSpec(memory_space=pltpu.MemorySpace.SMEM),   # weights (M,)
            pl.BlockSpec(memory_space=pltpu.MemorySpace.SMEM),   # temps (2,)
            pl.BlockSpec(memory_space=pltpu.MemorySpace.VMEM),   # x f32 (B, D)
            pl.BlockSpec(memory_space=pltpu.MemorySpace.VMEM),   # fused W bf16 (D, N_FUSED)
            pl.BlockSpec(memory_space=pltpu.MemorySpace.VMEM),   # fused bias f32 (1, N_FUSED)
        ],
        out_specs=pl.BlockSpec(memory_space=pltpu.MemorySpace.VMEM),
    )(norm_weights, temps, x2d_f32, w_fused, b_fused)


# ------------------------------ device-side forward ---------------------------
@jax.jit
def _forward_device(x_nchw, w_fused, b_fused, raw_weights, temps):
    x2d = x_nchw.reshape(x_nchw.shape[0], -1)          # free reshape; bf16 cast in-kernel
    norm_weights = jax.nn.softmax(raw_weights, axis=0)

    packed = _run_fused(norm_weights, temps, x2d, w_fused, b_fused)   # (B, 128)

    ens_food = packed[:, :F_CLS]
    ens_cuis = packed[:, F_CLS:F_CLS + CU_CLS]
    ens_nutr = packed[:, F_CLS + CU_CLS:K_TOT]
    meta_vec = packed[0, K_TOT:K_TOT + N_SCAL]         # (8,) all metadata scalars
    return ens_food, ens_cuis, ens_nutr, norm_weights, meta_vec


def weighted_ensemble_forward(x_nchw, w_fused, b_fused, raw_weights, temps):
    (ens_food, ens_cuis, ens_nutr,
     norm_weights, meta_vec) = _forward_device(x_nchw, w_fused, b_fused,
                                               raw_weights, temps)

    # single host transfer for all metadata
    norm_w_h, meta_h = jax.device_get((norm_weights, meta_vec))
    meta_h = np.asarray(meta_h)
    metadata = {
        "model_weights": np.asarray(norm_w_h).tolist(),
        "model_confidences": meta_h[3:3 + M].tolist(),
        "food_uncertainty": float(meta_h[0]),
        "cuisine_uncertainty": float(meta_h[1]),
        "nutrition_variance": float(meta_h[2]),
        "ensemble_confidence": float(meta_h[6]),
        "prediction_diversity": float(meta_h[7]),
    }
    return ens_food, ens_cuis, ens_nutr, metadata


# ----------------------- parameter packing (done once) ------------------------
def pack_params(w_stack, b_stack):
    """w_stack: (M, D, K_TOT) f32, b_stack: (M, K_TOT) f32 ->
       densified bf16 weight slab (D, M*K_PAD) with each model's heads at a
       64-lane block, plus fused f32 bias (1, M*K_PAD)."""
    wf = jnp.zeros((D, N_FUSED), jnp.float32)
    bf = jnp.zeros((1, N_FUSED), jnp.float32)
    for m in range(M):
        wf = wf.at[:, m * K_PAD:m * K_PAD + K_TOT].set(w_stack[m])
        bf = bf.at[:, m * K_PAD:m * K_PAD + K_TOT].set(b_stack[m])
    return wf.astype(jnp.bfloat16), bf


# ------------------------- pure-JAX reference (check) -------------------------
def _reference_forward(x_nchw, w_stack, b_stack, raw_weights, temps):
    # use the same bf16-rounded x / W the kernel sees, accumulate in f32
    x2d = x_nchw.reshape(x_nchw.shape[0], -1).astype(jnp.bfloat16).astype(jnp.float32)
    w = w_stack.astype(jnp.bfloat16).astype(jnp.float32)
    preds = jnp.einsum("bd,mdk->mbk", x2d, w) + b_stack[:, None, :]   # (M, B, K_TOT)

    norm_w = jax.nn.softmax(raw_weights, axis=0)
    food = preds[:, :, :F_CLS]
    cuis = preds[:, :, F_CLS:F_CLS + CU_CLS]
    nutr = preds[:, :, F_CLS + CU_CLS:]
    wcol = norm_w[:, None, None]
    ens_food = jnp.sum(wcol * food, axis=0) / temps[0]
    ens_cuis = jnp.sum(wcol * cuis, axis=0) / temps[1]
    ens_nutr = jnp.sum(wcol * nutr, axis=0)

    def ent(p):
        pc = jnp.clip(p, EPS, 1.0 - EPS)
        return -jnp.sum(pc * jnp.log(pc), axis=-1)

    pf = jax.nn.softmax(food, axis=-1)
    pc = jax.nn.softmax(cuis, axis=-1)
    food_mi = ent(jnp.mean(pf, axis=0)) - jnp.mean(ent(pf), axis=0)   # (B,)
    cuis_mi = ent(jnp.mean(pc, axis=0)) - jnp.mean(ent(pc), axis=0)   # (B,)
    nvar = jnp.mean(jnp.var(nutr, axis=0, ddof=1), axis=1)            # (B,)
    conf = jnp.mean(jnp.max(pf, axis=-1), axis=1)                     # (M,)
    return ens_food, ens_cuis, ens_nutr, food_mi, cuis_mi, nvar, conf


# ------------------------------------ main ------------------------------------
if __name__ == "__main__":
    key = jax.random.PRNGKey(0)
    kx, kw, kb = jax.random.split(key, 3)

    x = jax.random.normal(kx, (B, C, H, W), dtype=jnp.float32)
    w_stack = 0.02 * jax.random.normal(kw, (M, D, K_TOT), dtype=jnp.float32)
    b_stack = 0.01 * jax.random.normal(kb, (M, K_TOT), dtype=jnp.float32)

    # WeightedEnsemble.__init__ defaults: uniform weights, temperatures = 1.0
    raw_weights = jnp.full((M,), 1.0 / M, dtype=jnp.float32)
    temps = jnp.ones((2,), dtype=jnp.float32)   # [temperature_food, temperature_cuisine]

    w_fused, b_fused = pack_params(w_stack, b_stack)

    ens_food, ens_cuis, ens_nutr, metadata = weighted_ensemble_forward(
        x, w_fused, b_fused, raw_weights, temps)
    jax.block_until_ready((ens_food, ens_cuis, ens_nutr))

    # sanity check of the fused kernel against a pure-JAX reference
    rf, rc, rn, rfmi, rcmi, rnv, rconf = _reference_forward(
        x, w_stack, b_stack, raw_weights, temps)
    np.testing.assert_allclose(np.asarray(ens_food), np.asarray(rf), rtol=2e-3, atol=2e-3)
    np.testing.assert_allclose(np.asarray(ens_cuis), np.asarray(rc), rtol=2e-3, atol=2e-3)
    np.testing.assert_allclose(np.asarray(ens_nutr), np.asarray(rn), rtol=2e-3, atol=2e-3)
    np.testing.assert_allclose(metadata["food_uncertainty"], float(jnp.mean(rfmi)), atol=2e-3)
    np.testing.assert_allclose(metadata["cuisine_uncertainty"], float(jnp.mean(rcmi)), atol=2e-3)
    np.testing.assert_allclose(metadata["nutrition_variance"], float(jnp.mean(rnv)), atol=2e-3)
    np.testing.assert_allclose(np.asarray(metadata["model_confidences"]),
                               np.asarray(rconf), rtol=2e-3, atol=2e-3)
    np.testing.assert_allclose(metadata["ensemble_confidence"], float(jnp.max(rconf)), atol=2e-3)
    np.testing.assert_allclose(metadata["prediction_diversity"], float(jnp.std(rconf)), atol=2e-3)

    print("KERNEL_OK")
</pallas_src>

<mosaic_0001>
module attributes {stable_mosaic.version = 11 : i64} {
  func.func @_fused_kernel(%arg0: memref<3xf32, #tpu.memory_space<smem>>, %arg1: memref<2xf32, #tpu.memory_space<smem>>, %arg2: memref<2x1024xf32, #tpu.memory_space<vmem>>, %arg3: memref<1024x192xbf16, #tpu.memory_space<vmem>>, %arg4: memref<1x192xf32, #tpu.memory_space<vmem>>, %arg5: memref<2x128xf32, #tpu.memory_space<vmem>>) attributes {dimension_semantics = [], scalar_prefetch = 0 : i64, scratch_operands = 0 : i64, tpu.core_type = #tpu.core_type<tc>} {
    %c0 = arith.constant 0 : index
    %c0_0 = arith.constant 0 : index
    %0 = vector.load %arg2[%c0, %c0_0] : memref<2x1024xf32, #tpu.memory_space<vmem>>, vector<2x1024xf32>
    %1 = arith.truncf %0 : vector<2x1024xf32> to vector<2x1024xbf16>
    %c0_1 = arith.constant 0 : index
    %c0_2 = arith.constant 0 : index
    %2 = vector.load %arg3[%c0_1, %c0_2] : memref<1024x192xbf16, #tpu.memory_space<vmem>>, vector<1024x192xbf16>
    %cst = arith.constant dense<0.000000e+00> : vector<2x192xf32>
    %3 = tpu.matmul %1, %2, %cst {dimension_numbers = #tpu.dot_dimension_numbers<[1], [0], [0], [1], [0, 0, 1, 1], [], []>} : vector<2x1024xbf16>, vector<1024x192xbf16>, vector<2x192xf32> -> vector<2x192xf32>
    %c0_3 = arith.constant 0 : index
    %c0_4 = arith.constant 0 : index
    %4 = vector.load %arg4[%c0_3, %c0_4] : memref<1x192xf32, #tpu.memory_space<vmem>>, vector<1x192xf32>
    %5 = vector.broadcast %4 : vector<1x192xf32> to vector<2x192xf32>
    %6 = arith.addf %3, %5 : vector<2x192xf32>
    %c0_5 = arith.constant 0 : index
    %7 = memref.load %arg0[%c0_5] : memref<3xf32, #tpu.memory_space<smem>>
    %8 = vector.extract_strided_slice %6 {offsets = [0, 0], sizes = [2, 64], strides = [1, 1]} : vector<2x192xf32> to vector<2x64xf32>
    %9 = vector.broadcast %7 : f32 to vector<2x64xf32>
    %10 = arith.mulf %9, %8 : vector<2x64xf32>
    %c1 = arith.constant 1 : index
    %11 = memref.load %arg0[%c1] : memref<3xf32, #tpu.memory_space<smem>>
    %12 = vector.extract_strided_slice %6 {offsets = [0, 64], sizes = [2, 64], strides = [1, 1]} : vector<2x192xf32> to vector<2x64xf32>
    %13 = vector.broadcast %11 : f32 to vector<2x64xf32>
    %14 = arith.mulf %13, %12 : vector<2x64xf32>
    %15 = arith.addf %10, %14 : vector<2x64xf32>
    %c2 = arith.constant 2 : index
    %16 = memref.load %arg0[%c2] : memref<3xf32, #tpu.memory_space<smem>>
    %17 = vector.extract_strided_slice %6 {offsets = [0, 128], sizes = [2, 64], strides = [1, 1]} : vector<2x192xf32> to vector<2x64xf32>
    %18 = vector.broadcast %16 : f32 to vector<2x64xf32>
    %19 = arith.mulf %18, %17 : vector<2x64xf32>
    %20 = arith.addf %15, %19 : vector<2x64xf32>
    %21 = tpu.iota {dimensions = array<i32: 1>} : vector<1x64xi32>
    %c32_i32 = arith.constant 32 : i32
    %22 = vector.broadcast %c32_i32 : i32 to vector<1x64xi32>
    %23 = arith.cmpi slt, %21, %22 : vector<1x64xi32>
    %c0_6 = arith.constant 0 : index
    %24 = memref.load %arg1[%c0_6] : memref<2xf32, #tpu.memory_space<smem>>
    %c48_i32 = arith.constant 48 : i32
    %25 = vector.broadcast %c48_i32 : i32 to vector<1x64xi32>
    %26 = arith.cmpi slt, %21, %25 : vector<1x64xi32>
    %c1_7 = arith.constant 1 : index
    %27 = memref.load %arg1[%c1_7] : memref<2xf32, #tpu.memory_space<smem>>
    %cst_8 = arith.constant 1.000000e+00 : f32
    %28 = vector.broadcast %27 : f32 to vector<1x64xf32>
    %29 = vector.broadcast %cst_8 : f32 to vector<1x64xf32>
    %30 = arith.select %26, %28, %29 : vector<1x64xi1>, vector<1x64xf32>
    %31 = vector.broadcast %24 : f32 to vector<1x64xf32>
    %32 = arith.select %23, %31, %30 : vector<1x64xi1>, vector<1x64xf32>
    %33 = vector.broadcast %32 : vector<1x64xf32> to vector<2x64xf32>
    %34 = arith.divf %20, %33 : vector<2x64xf32>
    %cst_9 = arith.constant 0.000000e+00 : f32
    %35 = vector.broadcast %cst_9 : f32 to vector<2x32xf32>
    %cst_10 = arith.constant 0.000000e+00 : f32
    %36 = vector.broadcast %cst_10 : f32 to vector<2x16xf32>
    %cst_11 = arith.constant 0.000000e+00 : f32
    %37 = vector.broadcast %cst_11 : f32 to vector<2x1xf32>
    %cst_12 = arith.constant 0.000000e+00 : f32
    %38 = vector.broadcast %cst_12 : f32 to vector<2x1xf32>
    %39 = vector.extract_strided_slice %6 {offsets = [0, 0], sizes = [2, 32], strides = [1, 1]} : vector<2x192xf32> to vector<2x32xf32>
    %40 = vector.extract_strided_slice %6 {offsets = [0, 32], sizes = [2, 16], strides = [1, 1]} : vector<2x192xf32> to vector<2x16xf32>
    %41 = vector.extract_strided_slice %6 {offsets = [0, 48], sizes = [2, 8], strides = [1, 1]} : vector<2x192xf32> to vector<2x8xf32>
    %cst_13 = arith.constant dense<0xFF800000> : vector<2xf32>
    %42 = vector.multi_reduction <maximumf>, %39, %cst_13 [1] : vector<2x32xf32> to vector<2xf32>
    %43 = vector.shape_cast %42 : vector<2xf32> to vector<2x1xf32>
    %44 = vector.broadcast %43 : vector<2x1xf32> to vector<2x32xf32>
    %45 = arith.subf %39, %44 : vector<2x32xf32>
    %46 = math.exp %45 : vector<2x32xf32>
    %cst_14 = arith.constant dense<0.000000e+00> : vector<2xf32>
    %47 = vector.multi_reduction <add>, %46, %cst_14 [1] : vector<2x32xf32> to vector<2xf32>
    %48 = vector.shape_cast %47 : vector<2xf32> to vector<2x1xf32>
    %49 = tpu.reciprocal %48 {approx = true} : vector<2x1xf32> -> vector<2x1xf32>
    %50 = vector.broadcast %49 : vector<2x1xf32> to vector<2x32xf32>
    %51 = arith.mulf %46, %50 : vector<2x32xf32>
    %cst_15 = arith.constant dense<0xFF800000> : vector<2xf32>
    %52 = vector.multi_reduction <maximumf>, %40, %cst_15 [1] : vector<2x16xf32> to vector<2xf32>
    %53 = vector.shape_cast %52 : vector<2xf32> to vector<2x1xf32>
    %54 = vector.broadcast %53 : vector<2x1xf32> to vector<2x16xf32>
    %55 = arith.subf %40, %54 : vector<2x16xf32>
    %56 = math.exp %55 : vector<2x16xf32>
    %cst_16 = arith.constant dense<0.000000e+00> : vector<2xf32>
    %57 = vector.multi_reduction <add>, %56, %cst_16 [1] : vector<2x16xf32> to vector<2xf32>
    %58 = vector.shape_cast %57 : vector<2xf32> to vector<2x1xf32>
    %59 = tpu.reciprocal %58 {approx = true} : vector<2x1xf32> -> vector<2x1xf32>
    %60 = vector.broadcast %59 : vector<2x1xf32> to vector<2x16xf32>
    %61 = arith.mulf %56, %60 : vector<2x16xf32>
    %cst_17 = arith.constant 0.333333343 : f32
    %62 = vector.broadcast %cst_17 : f32 to vector<2x32xf32>
    %63 = arith.mulf %51, %62 : vector<2x32xf32>
    %64 = arith.addf %35, %63 : vector<2x32xf32>
    %cst_18 = arith.constant 0.333333343 : f32
    %65 = vector.broadcast %cst_18 : f32 to vector<2x16xf32>
    %66 = arith.mulf %61, %65 : vector<2x16xf32>
    %67 = arith.addf %36, %66 : vector<2x16xf32>
    %cst_19 = arith.constant 9.99999993E-9 : f32
    %cst_20 = arith.constant 1.000000e+00 : f32
    %68 = vector.broadcast %cst_19 : f32 to vector<2x32xf32>
    %69 = arith.maximumf %68, %51 : vector<2x32xf32>
    %70 = vector.broadcast %cst_20 : f32 to vector<2x32xf32>
    %71 = arith.minimumf %70, %69 : vector<2x32xf32>
    %72 = math.log %71 : vector<2x32xf32>
    %73 = arith.mulf %71, %72 : vector<2x32xf32>
    %cst_21 = arith.constant dense<0.000000e+00> : vector<2xf32>
    %74 = vector.multi_reduction <add>, %73, %cst_21 [1] : vector<2x32xf32> to vector<2xf32>
    %75 = vector.shape_cast %74 : vector<2xf32> to vector<2x1xf32>
    %cst_22 = arith.constant 0.000000e+00 : f32
    %76 = vector.broadcast %cst_22 : f32 to vector<2x1xf32>
    %77 = arith.subf %76, %75 : vector<2x1xf32>
    %cst_23 = arith.constant 0.333333343 : f32
    %78 = vector.broadcast %cst_23 : f32 to vector<2x1xf32>
    %79 = arith.mulf %77, %78 : vector<2x1xf32>
    %80 = arith.addf %37, %79 : vector<2x1xf32>
    %cst_24 = arith.constant 9.99999993E-9 : f32
    %cst_25 = arith.constant 1.000000e+00 : f32
    %81 = vector.broadcast %cst_24 : f32 to vector<2x16xf32>
    %82 = arith.maximumf %81, %61 : vector<2x16xf32>
    %83 = vector.broadcast %cst_25 : f32 to vector<2x16xf32>
    %84 = arith.minimumf %83, %82 : vector<2x16xf32>
    %85 = math.log %84 : vector<2x16xf32>
    %86 = arith.mulf %84, %85 : vector<2x16xf32>
    %cst_26 = arith.constant dense<0.000000e+00> : vector<2xf32>
    %87 = vector.multi_reduction <add>, %86, %cst_26 [1] : vector<2x16xf32> to vector<2xf32>
    %88 = vector.shape_cast %87 : vector<2xf32> to vector<2x1xf32>
    %cst_27 = arith.constant 0.000000e+00 : f32
    %89 = vector.broadcast %cst_27 : f32 to vector<2x1xf32>
    %90 = arith.subf %89, %88 : vector<2x1xf32>
    %cst_28 = arith.constant 0.333333343 : f32
    %91 = vector.broadcast %cst_28 : f32 to vector<2x1xf32>
    %92 = arith.mulf %90, %91 : vector<2x1xf32>
    %93 = arith.addf %38, %92 : vector<2x1xf32>
    %cst_29 = arith.constant dense<0xFF800000> : vector<2xf32>
    %94 = vector.multi_reduction <maximumf>, %51, %cst_29 [1] : vector<2x32xf32> to vector<2xf32>
    %95 = vector.shape_cast %94 : vector<2xf32> to vector<2x1xf32>
    %cst_30 = arith.constant dense<0.000000e+00> : vector<1xf32>
    %96 = vector.multi_reduction <add>, %95, %cst_30 [0] : vector<2x1xf32> to vector<1xf32>
    %97 = vector.shape_cast %96 : vector<1xf32> to vector<1x1xf32>
    %cst_31 = arith.constant 2.000000e+00 : f32
    %98 = vector.broadcast %cst_31 : f32 to vector<1x1xf32>
    %99 = arith.divf %97, %98 : vector<1x1xf32>
    %100 = vector.extract_strided_slice %6 {offsets = [0, 64], sizes = [2, 32], strides = [1, 1]} : vector<2x192xf32> to vector<2x32xf32>
    %101 = vector.extract_strided_slice %6 {offsets = [0, 96], sizes = [2, 16], strides = [1, 1]} : vector<2x192xf32> to vector<2x16xf32>
    %102 = vector.extract_strided_slice %6 {offsets = [0, 112], sizes = [2, 8], strides = [1, 1]} : vector<2x192xf32> to vector<2x8xf32>
    %cst_32 = arith.constant dense<0xFF800000> : vector<2xf32>
    %103 = vector.multi_reduction <maximumf>, %100, %cst_32 [1] : vector<2x32xf32> to vector<2xf32>
    %104 = vector.shape_cast %103 : vector<2xf32> to vector<2x1xf32>
    %105 = vector.broadcast %104 : vector<2x1xf32> to vector<2x32xf32>
    %106 = arith.subf %100, %105 : vector<2x32xf32>
    %107 = math.exp %106 : vector<2x32xf32>
    %cst_33 = arith.constant dense<0.000000e+00> : vector<2xf32>
    %108 = vector.multi_reduction <add>, %107, %cst_33 [1] : vector<2x32xf32> to vector<2xf32>
    %109 = vector.shape_cast %108 : vector<2xf32> to vector<2x1xf32>
    %110 = tpu.reciprocal %109 {approx = true} : vector<2x1xf32> -> vector<2x1xf32>
    %111 = vector.broadcast %110 : vector<2x1xf32> to vector<2x32xf32>
    %112 = arith.mulf %107, %111 : vector<2x32xf32>
    %cst_34 = arith.constant dense<0xFF800000> : vector<2xf32>
    %113 = vector.multi_reduction <maximumf>, %101, %cst_34 [1] : vector<2x16xf32> to vector<2xf32>
    %114 = vector.shape_cast %113 : vector<2xf32> to vector<2x1xf32>
    %115 = vector.broadcast %114 : vector<2x1xf32> to vector<2x16xf32>
    %116 = arith.subf %101, %115 : vector<2x16xf32>
    %117 = math.exp %116 : vector<2x16xf32>
    %cst_35 = arith.constant dense<0.000000e+00> : vector<2xf32>
    %118 = vector.multi_reduction <add>, %117, %cst_35 [1] : vector<2x16xf32> to vector<2xf32>
    %119 = vector.shape_cast %118 : vector<2xf32> to vector<2x1xf32>
    %120 = tpu.reciprocal %119 {approx = true} : vector<2x1xf32> -> vector<2x1xf32>
    %121 = vector.broadcast %120 : vector<2x1xf32> to vector<2x16xf32>
    %122 = arith.mulf %117, %121 : vector<2x16xf32>
    %cst_36 = arith.constant 0.333333343 : f32
    %123 = vector.broadcast %cst_36 : f32 to vector<2x32xf32>
    %124 = arith.mulf %112, %123 : vector<2x32xf32>
    %125 = arith.addf %64, %124 : vector<2x32xf32>
    %cst_37 = arith.constant 0.333333343 : f32
    %126 = vector.broadcast %cst_37 : f32 to vector<2x16xf32>
    %127 = arith.mulf %122, %126 : vector<2x16xf32>
    %128 = arith.addf %67, %127 : vector<2x16xf32>
    %cst_38 = arith.constant 9.99999993E-9 : f32
    %cst_39 = arith.constant 1.000000e+00 : f32
    %129 = vector.broadcast %cst_38 : f32 to vector<2x32xf32>
    %130 = arith.maximumf %129, %112 : vector<2x32xf32>
    %131 = vector.broadcast %cst_39 : f32 to vector<2x32xf32>
    %132 = arith.minimumf %131, %130 : vector<2x32xf32>
    %133 = math.log %132 : vector<2x32xf32>
    %134 = arith.mulf %132, %133 : vector<2x32xf32>
    %cst_40 = arith.constant dense<0.000000e+00> : vector<2xf32>
    %135 = vector.multi_reduction <add>, %134, %cst_40 [1] : vector<2x32xf32> to vector<2xf32>
    %136 = vector.shape_cast %135 : vector<2xf32> to vector<2x1xf32>
    %cst_41 = arith.constant 0.000000e+00 : f32
    %137 = vector.broadcast %cst_41 : f32 to vector<2x1xf32>
    %138 = arith.subf %137, %136 : vector<2x1xf32>
    %cst_42 = arith.constant 0.333333343 : f32
    %139 = vector.broadcast %cst_42 : f32 to vector<2x1xf32>
    %140 = arith.mulf %138, %139 : vector<2x1xf32>
    %141 = arith.addf %80, %140 : vector<2x1xf32>
    %cst_43 = arith.constant 9.99999993E-9 : f32
    %cst_44 = arith.constant 1.000000e+00 : f32
    %142 = vector.broadcast %cst_43 : f32 to vector<2x16xf32>
    %143 = arith.maximumf %142, %122 : vector<2x16xf32>
    %144 = vector.broadcast %cst_44 : f32 to vector<2x16xf32>
    %145 = arith.minimumf %144, %143 : vector<2x16xf32>
    %146 = math.log %145 : vector<2x16xf32>
    %147 = arith.mulf %145, %146 : vector<2x16xf32>
    %cst_45 = arith.constant dense<0.000000e+00> : vector<2xf32>
    %148 = vector.multi_reduction <add>, %147, %cst_45 [1] : vector<2x16xf32> to vector<2xf32>
    %149 = vector.shape_cast %148 : vector<2xf32> to vector<2x1xf32>
    %cst_46 = arith.constant 0.000000e+00 : f32
    %150 = vector.broadcast %cst_46 : f32 to vector<2x1xf32>
    %151 = arith.subf %150, %149 : vector<2x1xf32>
    %cst_47 = arith.constant 0.333333343 : f32
    %152 = vector.broadcast %cst_47 : f32 to vector<2x1xf32>
    %153 = arith.mulf %151, %152 : vector<2x1xf32>
    %154 = arith.addf %93, %153 : vector<2x1xf32>
    %cst_48 = arith.constant dense<0xFF800000> : vector<2xf32>
    %155 = vector.multi_reduction <maximumf>, %112, %cst_48 [1] : vector<2x32xf32> to vector<2xf32>
    %156 = vector.shape_cast %155 : vector<2xf32> to vector<2x1xf32>
    %cst_49 = arith.constant dense<0.000000e+00> : vector<1xf32>
    %157 = vector.multi_reduction <add>, %156, %cst_49 [0] : vector<2x1xf32> to vector<1xf32>
    %158 = vector.shape_cast %157 : vector<1xf32> to vector<1x1xf32>
    %cst_50 = arith.constant 2.000000e+00 : f32
    %159 = vector.broadcast %cst_50 : f32 to vector<1x1xf32>
    %160 = arith.divf %158, %159 : vector<1x1xf32>
    %161 = vector.extract_strided_slice %6 {offsets = [0, 128], sizes = [2, 32], strides = [1, 1]} : vector<2x192xf32> to vector<2x32xf32>
    %162 = vector.extract_strided_slice %6 {offsets = [0, 160], sizes = [2, 16], strides = [1, 1]} : vector<2x192xf32> to vector<2x16xf32>
    %163 = vector.extract_strided_slice %6 {offsets = [0, 176], sizes = [2, 8], strides = [1, 1]} : vector<2x192xf32> to vector<2x8xf32>
    %cst_51 = arith.constant dense<0xFF800000> : vector<2xf32>
    %164 = vector.multi_reduction <maximumf>, %161, %cst_51 [1] : vector<2x32xf32> to vector<2xf32>
    %165 = vector.shape_cast %164 : vector<2xf32> to vector<2x1xf32>
    %166 = vector.broadcast %165 : vector<2x1xf32> to vector<2x32xf32>
    %167 = arith.subf %161, %166 : vector<2x32xf32>
    %168 = math.exp %167 : vector<2x32xf32>
    %cst_52 = arith.constant dense<0.000000e+00> : vector<2xf32>
    %169 = vector.multi_reduction <add>, %168, %cst_52 [1] : vector<2x32xf32> to vector<2xf32>
    %170 = vector.shape_cast %169 : vector<2xf32> to vector<2x1xf32>
    %171 = tpu.reciprocal %170 {approx = true} : vector<2x1xf32> -> vector<2x1xf32>
    %172 = vector.broadcast %171 : vector<2x1xf32> to vector<2x32xf32>
    %173 = arith.mulf %168, %172 : vector<2x32xf32>
    %cst_53 = arith.constant dense<0xFF800000> : vector<2xf32>
    %174 = vector.multi_reduction <maximumf>, %162, %cst_53 [1] : vector<2x16xf32> to vector<2xf32>
    %175 = vector.shape_cast %174 : vector<2xf32> to vector<2x1xf32>
    %176 = vector.broadcast %175 : vector<2x1xf32> to vector<2x16xf32>
    %177 = arith.subf %162, %176 : vector<2x16xf32>
    %178 = math.exp %177 : vector<2x16xf32>
    %cst_54 = arith.constant dense<0.000000e+00> : vector<2xf32>
    %179 = vector.multi_reduction <add>, %178, %cst_54 [1] : vector<2x16xf32> to vector<2xf32>
    %180 = vector.shape_cast %179 : vector<2xf32> to vector<2x1xf32>
    %181 = tpu.reciprocal %180 {approx = true} : vector<2x1xf32> -> vector<2x1xf32>
    %182 = vector.broadcast %181 : vector<2x1xf32> to vector<2x16xf32>
    %183 = arith.mulf %178, %182 : vector<2x16xf32>
    %cst_55 = arith.constant 0.333333343 : f32
    %184 = vector.broadcast %cst_55 : f32 to vector<2x32xf32>
    %185 = arith.mulf %173, %184 : vector<2x32xf32>
    %186 = arith.addf %125, %185 : vector<2x32xf32>
    %cst_56 = arith.constant 0.333333343 : f32
    %187 = vector.broadcast %cst_56 : f32 to vector<2x16xf32>
    %188 = arith.mulf %183, %187 : vector<2x16xf32>
    %189 = arith.addf %128, %188 : vector<2x16xf32>
    %cst_57 = arith.constant 9.99999993E-9 : f32
    %cst_58 = arith.constant 1.000000e+00 : f32
    %190 = vector.broadcast %cst_57 : f32 to vector<2x32xf32>
    %191 = arith.maximumf %190, %173 : vector<2x32xf32>
    %192 = vector.broadcast %cst_58 : f32 to vector<2x32xf32>
    %193 = arith.minimumf %192, %191 : vector<2x32xf32>
    %194 = math.log %193 : vector<2x32xf32>
    %195 = arith.mulf %193, %194 : vector<2x32xf32>
    %cst_59 = arith.constant dense<0.000000e+00> : vector<2xf32>
    %196 = vector.multi_reduction <add>, %195, %cst_59 [1] : vector<2x32xf32> to vector<2xf32>
    %197 = vector.shape_cast %196 : vector<2xf32> to vector<2x1xf32>
    %cst_60 = arith.constant 0.000000e+00 : f32
    %198 = vector.broadcast %cst_60 : f32 to vector<2x1xf32>
    %199 = arith.subf %198, %197 : vector<2x1xf32>
    %cst_61 = arith.constant 0.333333343 : f32
    %200 = vector.broadcast %cst_61 : f32 to vector<2x1xf32>
    %201 = arith.mulf %199, %200 : vector<2x1xf32>
    %202 = arith.addf %141, %201 : vector<2x1xf32>
    %cst_62 = arith.constant 9.99999993E-9 : f32
    %cst_63 = arith.constant 1.000000e+00 : f32
    %203 = vector.broadcast %cst_62 : f32 to vector<2x16xf32>
    %204 = arith.maximumf %203, %183 : vector<2x16xf32>
    %205 = vector.broadcast %cst_63 : f32 to vector<2x16xf32>
    %206 = arith.minimumf %205, %204 : vector<2x16xf32>
    %207 = math.log %206 : vector<2x16xf32>
    %208 = arith.mulf %206, %207 : vector<2x16xf32>
    %cst_64 = arith.constant dense<0.000000e+00> : vector<2xf32>
    %209 = vector.multi_reduction <add>, %208, %cst_64 [1] : vector<2x16xf32> to vector<2xf32>
    %210 = vector.shape_cast %209 : vector<2xf32> to vector<2x1xf32>
    %cst_65 = arith.constant 0.000000e+00 : f32
    %211 = vector.broadcast %cst_65 : f32 to vector<2x1xf32>
    %212 = arith.subf %211, %210 : vector<2x1xf32>
    %cst_66 = arith.constant 0.333333343 : f32
    %213 = vector.broadcast %cst_66 : f32 to vector<2x1xf32>
    %214 = arith.mulf %212, %213 : vector<2x1xf32>
    %215 = arith.addf %154, %214 : vector<2x1xf32>
    %cst_67 = arith.constant dense<0xFF800000> : vector<2xf32>
    %216 = vector.multi_reduction <maximumf>, %173, %cst_67 [1] : vector<2x32xf32> to vector<2xf32>
    %217 = vector.shape_cast %216 : vector<2xf32> to vector<2x1xf32>
    %cst_68 = arith.constant dense<0.000000e+00> : vector<1xf32>
    %218 = vector.multi_reduction <add>, %217, %cst_68 [0] : vector<2x1xf32> to vector<1xf32>
    %219 = vector.shape_cast %218 : vector<1xf32> to vector<1x1xf32>
    %cst_69 = arith.constant 2.000000e+00 : f32
    %220 = vector.broadcast %cst_69 : f32 to vector<1x1xf32>
    %221 = arith.divf %219, %220 : vector<1x1xf32>
    %cst_70 = arith.constant 9.99999993E-9 : f32
    %cst_71 = arith.constant 1.000000e+00 : f32
    %222 = vector.broadcast %cst_70 : f32 to vector<2x32xf32>
    %223 = arith.maximumf %222, %186 : vector<2x32xf32>
    %224 = vector.broadcast %cst_71 : f32 to vector<2x32xf32>
    %225 = arith.minimumf %224, %223 : vector<2x32xf32>
    %226 = math.log %225 : vector<2x32xf32>
    %227 = arith.mulf %225, %226 : vector<2x32xf32>
    %cst_72 = arith.constant dense<0.000000e+00> : vector<2xf32>
    %228 = vector.multi_reduction <add>, %227, %cst_72 [1] : vector<2x32xf32> to vector<2xf32>
    %229 = vector.shape_cast %228 : vector<2xf32> to vector<2x1xf32>
    %cst_73 = arith.constant 0.000000e+00 : f32
    %230 = vector.broadcast %cst_73 : f32 to vector<2x1xf32>
    %231 = arith.subf %230, %229 : vector<2x1xf32>
    %232 = arith.subf %231, %202 : vector<2x1xf32>
    %cst_74 = arith.constant 9.99999993E-9 : f32
    %cst_75 = arith.constant 1.000000e+00 : f32
    %233 = vector.broadcast %cst_74 : f32 to vector<2x16xf32>
    %234 = arith.maximumf %233, %189 : vector<2x16xf32>
    %235 = vector.broadcast %cst_75 : f32 to vector<2x16xf32>
    %236 = arith.minimumf %235, %234 : vector<2x16xf32>
    %237 = math.log %236 : vector<2x16xf32>
    %238 = arith.mulf %236, %237 : vector<2x16xf32>
    %cst_76 = arith.constant dense<0.000000e+00> : vector<2xf32>
    %239 = vector.multi_reduction <add>, %238, %cst_76 [1] : vector<2x16xf32> to vector<2xf32>
    %240 = vector.shape_cast %239 : vector<2xf32> to vector<2x1xf32>
    %cst_77 = arith.constant 0.000000e+00 : f32
    %241 = vector.broadcast %cst_77 : f32 to vector<2x1xf32>
    %242 = arith.subf %241, %240 : vector<2x1xf32>
    %243 = arith.subf %242, %215 : vector<2x1xf32>
    %cst_78 = arith.constant dense<0.000000e+00> : vector<1xf32>
    %244 = vector.multi_reduction <add>, %232, %cst_78 [0] : vector<2x1xf32> to vector<1xf32>
    %245 = vector.shape_cast %244 : vector<1xf32> to vector<1x1xf32>
    %cst_79 = arith.constant 2.000000e+00 : f32
    %246 = vector.broadcast %cst_79 : f32 to vector<1x1xf32>
    %247 = arith.divf %245, %246 : vector<1x1xf32>
    %cst_80 = arith.constant dense<0.000000e+00> : vector<1xf32>
    %248 = vector.multi_reduction <add>, %243, %cst_80 [0] : vector<2x1xf32> to vector<1xf32>
    %249 = vector.shape_cast %248 : vector<1xf32> to vector<1x1xf32>
    %cst_81 = arith.constant 2.000000e+00 : f32
    %250 = vector.broadcast %cst_81 : f32 to vector<1x1xf32>
    %251 = arith.divf %249, %250 : vector<1x1xf32>
    %252 = arith.addf %41, %102 : vector<2x8xf32>
    %253 = arith.addf %252, %163 : vector<2x8xf32>
    %cst_82 = arith.constant 0.333333343 : f32
    %254 = vector.broadcast %cst_82 : f32 to vector<2x8xf32>
    %255 = arith.mulf %253, %254 : vector<2x8xf32>
    %cst_83 = arith.constant 0.000000e+00 : f32
    %256 = vector.broadcast %cst_83 : f32 to vector<2x8xf32>
    %257 = arith.subf %41, %255 : vector<2x8xf32>
    %258 = arith.mulf %257, %257 : vector<2x8xf32>
    %259 = arith.addf %256, %258 : vector<2x8xf32>
    %260 = arith.subf %102, %255 : vector<2x8xf32>
    %261 = arith.mulf %260, %260 : vector<2x8xf32>
    %262 = arith.addf %259, %261 : vector<2x8xf32>
    %263 = arith.subf %163, %255 : vector<2x8xf32>
    %264 = arith.mulf %263, %263 : vector<2x8xf32>
    %265 = arith.addf %262, %264 : vector<2x8xf32>
    %cst_84 = arith.constant 5.000000e-01 : f32
    %266 = vector.broadcast %cst_84 : f32 to vector<2x8xf32>
    %267 = arith.mulf %265, %266 : vector<2x8xf32>
    %cst_85 = arith.constant dense<0.000000e+00> : vector<2xf32>
    %268 = vector.multi_reduction <add>, %267, %cst_85 [1] : vector<2x8xf32> to vector<2xf32>
    %269 = vector.shape_cast %268 : vector<2xf32> to vector<2x1xf32>
    %cst_86 = arith.constant 8.000000e+00 : f32
    %270 = vector.broadcast %cst_86 : f32 to vector<2x1xf32>
    %271 = arith.divf %269, %270 : vector<2x1xf32>
    %cst_87 = arith.constant dense<0.000000e+00> : vector<1xf32>
    %272 = vector.multi_reduction <add>, %271, %cst_87 [0] : vector<2x1xf32> to vector<1xf32>
    %273 = vector.shape_cast %272 : vector<1xf32> to vector<1x1xf32>
    %cst_88 = arith.constant 2.000000e+00 : f32
    %274 = vector.broadcast %cst_88 : f32 to vector<1x1xf32>
    %275 = arith.divf %273, %274 : vector<1x1xf32>
    %276 = arith.maximumf %99, %160 : vector<1x1xf32>
    %277 = arith.maximumf %276, %221 : vector<1x1xf32>
    %278 = arith.addf %99, %160 : vector<1x1xf32>
    %279 = arith.addf %278, %221 : vector<1x1xf32>
    %cst_89 = arith.constant 0.333333343 : f32
    %280 = vector.broadcast %cst_89 : f32 to vector<1x1xf32>
    %281 = arith.mulf %279, %280 : vector<1x1xf32>
    %282 = arith.subf %99, %281 : vector<1x1xf32>
    %283 = arith.mulf %282, %282 : vector<1x1xf32>
    %284 = arith.subf %160, %281 : vector<1x1xf32>
    %285 = arith.mulf %284, %284 : vector<1x1xf32>
    %286 = arith.addf %283, %285 : vector<1x1xf32>
    %287 = arith.subf %221, %281 : vector<1x1xf32>
    %288 = arith.mulf %287, %287 : vector<1x1xf32>
    %289 = arith.addf %286, %288 : vector<1x1xf32>
    %cst_90 = arith.constant 0.333333343 : f32
    %290 = vector.broadcast %cst_90 : f32 to vector<1x1xf32>
    %291 = arith.mulf %289, %290 : vector<1x1xf32>
    %292 = math.sqrt %291 : vector<1x1xf32>
    %293 = tpu.iota {dimensions = array<i32: 1>} : vector<2x64xi32>
    %c56_i32 = arith.constant 56 : i32
    %294 = vector.broadcast %c56_i32 : i32 to vector<2x64xi32>
    %295 = arith.cmpi eq, %293, %294 : vector<2x64xi32>
    %296 = vector.shape_cast %247 : vector<1x1xf32> to vector<1x1xf32>
    %297 = vector.broadcast %296 : vector<1x1xf32> to vector<2x64xf32>
    %298 = arith.select %295, %297, %34 : vector<2x64xi1>, vector<2x64xf32>
    %c57_i32 = arith.constant 57 : i32
    %299 = vector.broadcast %c57_i32 : i32 to vector<2x64xi32>
    %300 = arith.cmpi eq, %293, %299 : vector<2x64xi32>
    %301 = vector.shape_cast %251 : vector<1x1xf32> to vector<1x1xf32>
    %302 = vector.broadcast %301 : vector<1x1xf32> to vector<2x64xf32>
    %303 = arith.select %300, %302, %298 : vector<2x64xi1>, vector<2x64xf32>
    %c58_i32 = arith.constant 58 : i32
    %304 = vector.broadcast %c58_i32 : i32 to vector<2x64xi32>
    %305 = arith.cmpi eq, %293, %304 : vector<2x64xi32>
    %306 = vector.shape_cast %275 : vector<1x1xf32> to vector<1x1xf32>
    %307 = vector.broadcast %306 : vector<1x1xf32> to vector<2x64xf32>
    %308 = arith.select %305, %307, %303 : vector<2x64xi1>, vector<2x64xf32>
    %c59_i32 = arith.constant 59 : i32
    %309 = vector.broadcast %c59_i32 : i32 to vector<2x64xi32>
    %310 = arith.cmpi eq, %293, %309 : vector<2x64xi32>
    %311 = vector.shape_cast %99 : vector<1x1xf32> to vector<1x1xf32>
    %312 = vector.broadcast %311 : vector<1x1xf32> to vector<2x64xf32>
    %313 = arith.select %310, %312, %308 : vector<2x64xi1>, vector<2x64xf32>
    %c60_i32 = arith.constant 60 : i32
    %314 = vector.broadcast %c60_i32 : i32 to vector<2x64xi32>
    %315 = arith.cmpi eq, %293, %314 : vector<2x64xi32>
    %316 = vector.shape_cast %160 : vector<1x1xf32> to vector<1x1xf32>
    %317 = vector.broadcast %316 : vector<1x1xf32> to vector<2x64xf32>
    %318 = arith.select %315, %317, %313 : vector<2x64xi1>, vector<2x64xf32>
    %c61_i32 = arith.constant 61 : i32
    %319 = vector.broadcast %c61_i32 : i32 to vector<2x64xi32>
    %320 = arith.cmpi eq, %293, %319 : vector<2x64xi32>
    %321 = vector.shape_cast %221 : vector<1x1xf32> to vector<1x1xf32>
    %322 = vector.broadcast %321 : vector<1x1xf32> to vector<2x64xf32>
    %323 = arith.select %320, %322, %318 : vector<2x64xi1>, vector<2x64xf32>
    %c62_i32 = arith.constant 62 : i32
    %324 = vector.broadcast %c62_i32 : i32 to vector<2x64xi32>
    %325 = arith.cmpi eq, %293, %324 : vector<2x64xi32>
    %326 = vector.shape_cast %277 : vector<1x1xf32> to vector<1x1xf32>
    %327 = vector.broadcast %326 : vector<1x1xf32> to vector<2x64xf32>
    %328 = arith.select %325, %327, %323 : vector<2x64xi1>, vector<2x64xf32>
    %c63_i32 = arith.constant 63 : i32
    %329 = vector.broadcast %c63_i32 : i32 to vector<2x64xi32>
    %330 = arith.cmpi eq, %293, %329 : vector<2x64xi32>
    %331 = vector.shape_cast %292 : vector<1x1xf32> to vector<1x1xf32>
    %332 = vector.broadcast %331 : vector<1x1xf32> to vector<2x64xf32>
    %333 = arith.select %330, %332, %328 : vector<2x64xi1>, vector<2x64xf32>
    %cst_91 = arith.constant 0.000000e+00 : f32
    %334 = vector.broadcast %cst_91 : f32 to vector<2x64xf32>
    %335 = tpu.concatenate %333, %334 in 1 : vector<2x64xf32>, vector<2x64xf32> -> vector<2x128xf32>
    %c0_92 = arith.constant 0 : index
    %c0_93 = arith.constant 0 : index
    %336 = vector.load %arg5[%c0_92, %c0_93] : memref<2x128xf32, #tpu.memory_space<vmem>>, vector<2x128xf32>
    tpu.vector_store %arg5[%c0_92, %c0_93], %335 {strides = array<i32>} : memref<2x128xf32, #tpu.memory_space<vmem>>, vector<2x128xf32>,
    return
  }
}

</mosaic_0001>

<llo_original>
// kernel: _forward_device.1
$region0: #{_forward_device.1}
  #allocation0 [shape = 'u32[]', space=smem, size = 0x4, offset = 0x4, fixed_abs, tag = 'smem constant byte address 0x4 - core index']
  #allocation1 [shape = 'u32[144,128]{1,0:T(1,128)}', space=vmem, size = 0x12000, scoped, tag = 'internal scratch']
  %s0 = inlined_call_operand.vmem [shape: f32[3], index: 0, kind: input, shape index: {}]
  %s1 = inlined_call_operand.vmem [shape: f32[2], index: 1, kind: input, shape index: {}]
  %s2 = inlined_call_operand.vmem [shape: f32[2,1024], index: 2, kind: input, shape index: {}]
  %s3 = inlined_call_operand.vmem [shape: bf16[1024,192], index: 3, kind: input, shape index: {}]
  %s4 = inlined_call_operand.vmem [shape: f32[1,192], index: 4, kind: input, shape index: {}]
  %s5 = inlined_call_operand.vmem [shape: f32[2,128], index: 5, kind: output, shape index: {}]
  %s6 = sld [smem:[#allocation0]]
  $region38: #{_forward_device.1} parent=0
    _
  %s8 = ssub.s32 1, %s6
  %s9 = scalar_select 0, %s8, %s6
  $region1: #{_forward_device.1} parent=0
    #allocation2 [shape = 'u8[512]{0}', space=smem, size = 0x200, scoped, tag = 'input window, operand 0, single buffered']
    #allocation3 [shape = 's32[1]{0}', space=sflag, size = 0x4, scoped, tag = 'scoped memory for _forward_device.1']
    #allocation4 [shape = 'u8[512]{0}', space=smem, size = 0x200, scoped, tag = 'input window, operand 1, single buffered']
    #allocation5 [shape = 's32[1]{0}', space=sflag, size = 0x4, scoped, tag = 'scoped memory for _forward_device.1']
    %10 = vsyncpa [#allocation3], 0
    %11 = vsyncpa [#allocation5], 0
    // Predicated region
    $region2: #{_forward_device.1} parent=1 // pred_check
      _
    $region3: #{_forward_device.1} parent=1 // pred_check_branch
      %13 = sbr.rel (0) target = $region5
    $region4: #{_forward_device.1} parent=1 // pred_region
      %s15 = ssub.s32 16, 16
      %16 = vsyncadd [#allocation3], %s15
      %s18 = sshll.u32 %s0, 4
      %s19 = int_to_ptr.vmem [resolvable:$true] %s18
      %21 = dma.vmem_to_smem %s19, 16, [#allocation2], [#allocation3]
    $region5: #{_forward_device.1} parent=1 // pred_fallthru
      _
    // Predicated region
    $region6: #{_forward_device.1} parent=1 // pred_check
      _
    $region7: #{_forward_device.1} parent=1 // pred_check_branch
      %23 = sbr.rel (0) target = $region9
    $region8: #{_forward_device.1} parent=1 // pred_region
      %s25 = ssub.s32 16, 16
      %26 = vsyncadd [#allocation5], %s25
      %s28 = sshll.u32 %s1, 4
      %s29 = int_to_ptr.vmem [resolvable:$true] %s28
      %31 = dma.vmem_to_smem %s29, 16, [#allocation4], [#allocation5]
    $region9: #{_forward_device.1} parent=1 // pred_fallthru
      _
    // Predicated region
    $region10: #{_forward_device.1} parent=1 // pred_check
      _
    $region11: #{_forward_device.1} parent=1 // pred_check_branch
      %33 = sbr.rel (0) target = $region13
    $region12: #{_forward_device.1} parent=1 // pred_region
      _
    $region13: #{_forward_device.1} parent=1 // pred_fallthru
      _
    // Predicated region
    $region14: #{_forward_device.1} parent=1 // pred_check
      _
    $region15: #{_forward_device.1} parent=1 // pred_check_branch
      %35 = sbr.rel (0) target = $region17
    $region16: #{_forward_device.1} parent=1 // pred_region
      _
    $region17: #{_forward_device.1} parent=1 // pred_fallthru
      _
    // Predicated region
    $region18: #{_forward_device.1} parent=1 // pred_check
      _
    $region19: #{_forward_device.1} parent=1 // pred_check_branch
      %37 = sbr.rel (0) target = $region21
    $region20: #{_forward_device.1} parent=1 // pred_region
      _
    $region21: #{_forward_device.1} parent=1 // pred_fallthru
      _
    // Predicated region
    $region22: #{_forward_device.1} parent=1 // pred_check
      _
    $region23: #{_forward_device.1} parent=1 // pred_check_branch
      %39 = sbr.rel (0) target = $region25
    $region24: #{_forward_device.1} parent=1 // pred_region
      %40 = dma.done [#allocation3], 16
    $region25: #{_forward_device.1} parent=1 // pred_fallthru
      _
    // Predicated region
    $region26: #{_forward_device.1} parent=1 // pred_check
      _
    $region27: #{_forward_device.1} parent=1 // pred_check_branch
      %42 = sbr.rel (0) target = $region29
    $region28: #{_forward_device.1} parent=1 // pred_region
      %43 = dma.done [#allocation5], 16
    $region29: #{_forward_device.1} parent=1 // pred_fallthru
      _
    %44 = sfence
    %v45 = vld [vmem:[%s2] sm:$0xff]
    %v46 = vld [vmem:[%s2 + $0x8] sm:$0xff]
    %v49 = vcombine.high %v45, %v45
    %v51 = vunpack.c.l.s4 1983009808
    %v52 = vunpack.c.0.s8 %v51
    %v53 = vlaneseq
    %v54 = vshrl.u32 %v53, 7
    %v55 = vsub.s32 %v52, %v54
    %v56 = vrot.slane %v45, %v55
    %v58 = vunpack.c.l.s4 1983009808
    %v59 = vunpack.c.0.s8 %v58
    %v60 = vlaneseq
    %v61 = vshrl.u32 %v60, 7
    %v62 = vsub.s32 %v59, %v61
    %v63 = vrot.slane %v49, %v62
    %v64 = vcombine.high %v56, %v56
    %v65 = vcombine.high %v63, %v63
    %v66 = vcombine.high %v46, %v46
    %v68 = vunpack.c.l.s4 1983009808
    %v69 = vunpack.c.0.s8 %v68
    %v70 = vlaneseq
    %v71 = vshrl.u32 %v70, 7
    %v72 = vsub.s32 %v69, %v71
    %v73 = vrot.slane %v46, %v72
    %v75 = vunpack.c.l.s4 1983009808
    %v76 = vunpack.c.0.s8 %v75
    %v77 = vlaneseq
    %v78 = vshrl.u32 %v77, 7
    %v79 = vsub.s32 %v76, %v78
    %v80 = vrot.slane %v66, %v79
    %v81 = vcombine.high %v73, %v73
    %v82 = vcombine.high %v80, %v80
    %v91 = vpack.c.bf16 %v56, %v56
    %v92 = vpack.c.bf16 %v64, %v64
    %v93 = vpack.c.bf16 %v63, %v63
    %v94 = vpack.c.bf16 %v65, %v65
    %v95 = vpack.c.bf16 %v73, %v73
    %v96 = vpack.c.bf16 %v81, %v81
    %v97 = vpack.c.bf16 %v80, %v80
    %v98 = vpack.c.bf16 %v82, %v82
    %v99 = vld [vmem:[%s3] sm:$0xff]
    %v100 = vld [vmem:[%s3 + $0x8] sm:$0xff]
    %v101 = vld [vmem:[%s3 + $0x10] sm:$0xff]
    %v102 = vld [vmem:[%s3 + $0x18] sm:$0xff]
    %v103 = vld [vmem:[%s3 + $0x20] sm:$0xff]
    %v104 = vld [vmem:[%s3 + $0x28] sm:$0xff]
    %v105 = vld [vmem:[%s3 + $0x30] sm:$0xff]
    %v106 = vld [vmem:[%s3 + $0x38] sm:$0xff]
    %v107 = vld [vmem:[%s3 + $0x40] sm:$0xff]
    %v108 = vld [vmem:[%s3 + $0x48] sm:$0xff]
    %v109 = vld [vmem:[%s3 + $0x50] sm:$0xff]
    %v110 = vld [vmem:[%s3 + $0x58] sm:$0xff]
    %v111 = vld [vmem:[%s3 + $0x60] sm:$0xff]
    %v112 = vld [vmem:[%s3 + $0x68] sm:$0xff]
    %v113 = vld [vmem:[%s3 + $0x70] sm:$0xff]
    %v114 = vld [vmem:[%s3 + $0x78] sm:$0xff]
    %v115 = vld [vmem:[%s3 + $0x80] sm:$0xff]
    %v116 = vld [vmem:[%s3 + $0x88] sm:$0xff]
    %v117 = vld [vmem:[%s3 + $0x90] sm:$0xff]
    %v118 = vld [vmem:[%s3 + $0x98] sm:$0xff]
    %v119 = vld [vmem:[%s3 + $0xa0] sm:$0xff]
    %v120 = vld [vmem:[%s3 + $0xa8] sm:$0xff]
    %v121 = vld [vmem:[%s3 + $0xb0] sm:$0xff]
    %v122 = vld [vmem:[%s3 + $0xb8] sm:$0xff]
    %v123 = vld [vmem:[%s3 + $0xc0] sm:$0xff]
    %v124 = vld [vmem:[%s3 + $0xc8] sm:$0xff]
    %v125 = vld [vmem:[%s3 + $0xd0] sm:$0xff]
    %v126 = vld [vmem:[%s3 + $0xd8] sm:$0xff]
    %v127 = vld [vmem:[%s3 + $0xe0] sm:$0xff]
    %v128 = vld [vmem:[%s3 + $0xe8] sm:$0xff]
    %v129 = vld [vmem:[%s3 + $0xf0] sm:$0xff]
    %v130 = vld [vmem:[%s3 + $0xf8] sm:$0xff]
    %v131 = vld [vmem:[%s3 + $0x100] sm:$0xff]
    %v132 = vld [vmem:[%s3 + $0x108] sm:$0xff]
    %v133 = vld [vmem:[%s3 + $0x110] sm:$0xff]
    %v134 = vld [vmem:[%s3 + $0x118] sm:$0xff]
    %v135 = vld [vmem:[%s3 + $0x120] sm:$0xff]
    %v136 = vld [vmem:[%s3 + $0x128] sm:$0xff]
    %v137 = vld [vmem:[%s3 + $0x130] sm:$0xff]
    %v138 = vld [vmem:[%s3 + $0x138] sm:$0xff]
    %v139 = vld [vmem:[%s3 + $0x140] sm:$0xff]
    %v140 = vld [vmem:[%s3 + $0x148] sm:$0xff]
    %v141 = vld [vmem:[%s3 + $0x150] sm:$0xff]
    %v142 = vld [vmem:[%s3 + $0x158] sm:$0xff]
    %v143 = vld [vmem:[%s3 + $0x160] sm:$0xff]
    %v144 = vld [vmem:[%s3 + $0x168] sm:$0xff]
    %v145 = vld [vmem:[%s3 + $0x170] sm:$0xff]
    %v146 = vld [vmem:[%s3 + $0x178] sm:$0xff]
    %v147 = vld [vmem:[%s3 + $0x180] sm:$0xff]
    %v148 = vld [vmem:[%s3 + $0x188] sm:$0xff]
    %v149 = vld [vmem:[%s3 + $0x190] sm:$0xff]
    %v150 = vld [vmem:[%s3 + $0x198] sm:$0xff]
    %v151 = vld [vmem:[%s3 + $0x1a0] sm:$0xff]
    %v152 = vld [vmem:[%s3 + $0x1a8] sm:$0xff]
    %v153 = vld [vmem:[%s3 + $0x1b0] sm:$0xff]
    %v154 = vld [vmem:[%s3 + $0x1b8] sm:$0xff]
    %v155 = vld [vmem:[%s3 + $0x1c0] sm:$0xff]
    %v156 = vld [vmem:[%s3 + $0x1c8] sm:$0xff]
    %v157 = vld [vmem:[%s3 + $0x1d0] sm:$0xff]
    %v158 = vld [vmem:[%s3 + $0x1d8] sm:$0xff]
    %v159 = vld [vmem:[%s3 + $0x1e0] sm:$0xff]
    %v160 = vld [vmem:[%s3 + $0x1e8] sm:$0xff]
    %v161 = vld [vmem:[%s3 + $0x1f0] sm:$0xff]
    %v162 = vld [vmem:[%s3 + $0x1f8] sm:$0xff]
    %v163 = vld [vmem:[%s3 + $0x200] sm:$0xff]
    %v164 = vld [vmem:[%s3 + $0x208] sm:$0xff]
    %v165 = vld [vmem:[%s3 + $0x210] sm:$0xff]
    %v166 = vld [vmem:[%s3 + $0x218] sm:$0xff]
    %v167 = vld [vmem:[%s3 + $0x220] sm:$0xff]
    %v168 = vld [vmem:[%s3 + $0x228] sm:$0xff]
    %v169 = vld [vmem:[%s3 + $0x230] sm:$0xff]
    %v170 = vld [vmem:[%s3 + $0x238] sm:$0xff]
    %v171 = vld [vmem:[%s3 + $0x240] sm:$0xff]
    %v172 = vld [vmem:[%s3 + $0x248] sm:$0xff]
    %v173 = vld [vmem:[%s3 + $0x250] sm:$0xff]
    %v174 = vld [vmem:[%s3 + $0x258] sm:$0xff]
    %v175 = vld [vmem:[%s3 + $0x260] sm:$0xff]
    %v176 = vld [vmem:[%s3 + $0x268] sm:$0xff]
    %v177 = vld [vmem:[%s3 + $0x270] sm:$0xff]
    %v178 = vld [vmem:[%s3 + $0x278] sm:$0xff]
    %v179 = vld [vmem:[%s3 + $0x280] sm:$0xff]
    %v180 = vld [vmem:[%s3 + $0x288] sm:$0xff]
    %v181 = vld [vmem:[%s3 + $0x290] sm:$0xff]
    %v182 = vld [vmem:[%s3 + $0x298] sm:$0xff]
    %v183 = vld [vmem:[%s3 + $0x2a0] sm:$0xff]
    %v184 = vld [vmem:[%s3 + $0x2a8] sm:$0xff]
    %v185 = vld [vmem:[%s3 + $0x2b0] sm:$0xff]
    %v186 = vld [vmem:[%s3 + $0x2b8] sm:$0xff]
    %v187 = vld [vmem:[%s3 + $0x2c0] sm:$0xff]
    %v188 = vld [vmem:[%s3 + $0x2c8] sm:$0xff]
    %v189 = vld [vmem:[%s3 + $0x2d0] sm:$0xff]
    %v190 = vld [vmem:[%s3 + $0x2d8] sm:$0xff]
    %v191 = vld [vmem:[%s3 + $0x2e0] sm:$0xff]
    %v192 = vld [vmem:[%s3 + $0x2e8] sm:$0xff]
    %v193 = vld [vmem:[%s3 + $0x2f0] sm:$0xff]
    %v194 = vld [vmem:[%s3 + $0x2f8] sm:$0xff]
    %v195 = vld [vmem:[%s3 + $0x300] sm:$0xff]
    %v196 = vld [vmem:[%s3 + $0x308] sm:$0xff]
    %v197 = vld [vmem:[%s3 + $0x310] sm:$0xff]
    %v198 = vld [vmem:[%s3 + $0x318] sm:$0xff]
    %v199 = vld [vmem:[%s3 + $0x320] sm:$0xff]
    %v200 = vld [vmem:[%s3 + $0x328] sm:$0xff]
    %v201 = vld [vmem:[%s3 + $0x330] sm:$0xff]
    %v202 = vld [vmem:[%s3 + $0x338] sm:$0xff]
    %v203 = vld [vmem:[%s3 + $0x340] sm:$0xff]
    %v204 = vld [vmem:[%s3 + $0x348] sm:$0xff]
    %v205 = vld [vmem:[%s3 + $0x350] sm:$0xff]
    %v206 = vld [vmem:[%s3 + $0x358] sm:$0xff]
    %v207 = vld [vmem:[%s3 + $0x360] sm:$0xff]
    %v208 = vld [vmem:[%s3 + $0x368] sm:$0xff]
    %v209 = vld [vmem:[%s3 + $0x370] sm:$0xff]
    %v210 = vld [vmem:[%s3 + $0x378] sm:$0xff]
    %v211 = vld [vmem:[%s3 + $0x380] sm:$0xff]
    %v212 = vld [vmem:[%s3 + $0x388] sm:$0xff]
    %v213 = vld [vmem:[%s3 + $0x390] sm:$0xff]
    %v214 = vld [vmem:[%s3 + $0x398] sm:$0xff]
    %v215 = vld [vmem:[%s3 + $0x3a0] sm:$0xff]
    %v216 = vld [vmem:[%s3 + $0x3a8] sm:$0xff]
    %v217 = vld [vmem:[%s3 + $0x3b0] sm:$0xff]
    %v218 = vld [vmem:[%s3 + $0x3b8] sm:$0xff]
    %v219 = vld [vmem:[%s3 + $0x3c0] sm:$0xff]
    %v220 = vld [vmem:[%s3 + $0x3c8] sm:$0xff]
    %v221 = vld [vmem:[%s3 + $0x3d0] sm:$0xff]
    %v222 = vld [vmem:[%s3 + $0x3d8] sm:$0xff]
    %v223 = vld [vmem:[%s3 + $0x3e0] sm:$0xff]
    %v224 = vld [vmem:[%s3 + $0x3e8] sm:$0xff]
    %v225 = vld [vmem:[%s3 + $0x3f0] sm:$0xff]
    %v226 = vld [vmem:[%s3 + $0x3f8] sm:$0xff]
    %v227 = vld [vmem:[%s4] sm:$0x3]
    %v229 = vlaneseq
    %v230 = vshrl.u32 %v229, 7
    %v231 = vsub.s32 0, %v230
    %v232 = vrot.slane %v227, %v231
    %v233 = vlaneseq
    %v234 = vshrl.u32 %v233, 7
    %v235 = vsub.s32 1, %v234
    %v236 = vrot.slane %v227, %v235
    %v367 = vunpack.c.l.b16 %v99
    %v368 = vunpack.c.h.b16 %v99
    %v369 = vunpack.c.l.b16 %v100
    %v370 = vunpack.c.h.b16 %v100
    %v371 = vunpack.c.l.b16 %v101
    %v372 = vunpack.c.h.b16 %v101
    %v373 = vunpack.c.l.b16 %v102
    %v374 = vunpack.c.h.b16 %v102
    %v375 = vunpack.c.l.b16 %v103
    %v376 = vunpack.c.h.b16 %v103
    %v377 = vunpack.c.l.b16 %v104
    %v378 = vunpack.c.h.b16 %v104
    %v379 = vunpack.c.l.b16 %v105
    %v380 = vunpack.c.h.b16 %v105
    %v381 = vunpack.c.l.b16 %v106
    %v382 = vunpack.c.h.b16 %v106
    %v383 = vunpack.c.l.b16 %v107
    %v384 = vunpack.c.h.b16 %v107
    %v385 = vunpack.c.l.b16 %v108
    %v386 = vunpack.c.h.b16 %v108
    %v387 = vunpack.c.l.b16 %v109
    %v388 = vunpack.c.h.b16 %v109
    %v389 = vunpack.c.l.b16 %v110
    %v390 = vunpack.c.h.b16 %v110
    %v391 = vunpack.c.l.b16 %v111
    %v392 = vunpack.c.h.b16 %v111
    %v393 = vunpack.c.l.b16 %v112
    %v394 = vunpack.c.h.b16 %v112
    %v395 = vunpack.c.l.b16 %v113
    %v396 = vunpack.c.h.b16 %v113
    %v397 = vunpack.c.l.b16 %v114
    %v398 = vunpack.c.h.b16 %v114
    %v399 = vunpack.c.l.b16 %v115
    %v400 = vunpack.c.h.b16 %v115
    %v401 = vunpack.c.l.b16 %v116
    %v402 = vunpack.c.h.b16 %v116
    %v403 = vunpack.c.l.b16 %v117
    %v404 = vunpack.c.h.b16 %v117
    %v405 = vunpack.c.l.b16 %v118
    %v406 = vunpack.c.h.b16 %v118
    %v407 = vunpack.c.l.b16 %v119
    %v408 = vunpack.c.h.b16 %v119
    %v409 = vunpack.c.l.b16 %v120
    %v410 = vunpack.c.h.b16 %v120
    %v411 = vunpack.c.l.b16 %v121
    %v412 = vunpack.c.h.b16 %v121
    %v413 = vunpack.c.l.b16 %v122
    %v414 = vunpack.c.h.b16 %v122
    %v415 = vunpack.c.l.b16 %v123
    %v416 = vunpack.c.h.b16 %v123
    %v417 = vunpack.c.l.b16 %v124
    %v418 = vunpack.c.h.b16 %v124
    %v419 = vunpack.c.l.b16 %v125
    %v420 = vunpack.c.h.b16 %v125
    %v421 = vunpack.c.l.b16 %v126
    %v422 = vunpack.c.h.b16 %v126
    %v423 = vunpack.c.l.b16 %v127
    %v424 = vunpack.c.h.b16 %v127
    %v425 = vunpack.c.l.b16 %v128
    %v426 = vunpack.c.h.b16 %v128
    %v427 = vunpack.c.l.b16 %v129
    %v428 = vunpack.c.h.b16 %v129
    %v429 = vunpack.c.l.b16 %v130
    %v430 = vunpack.c.h.b16 %v130
    %v431 = vunpack.c.l.b16 %v131
    %v432 = vunpack.c.h.b16 %v131
    %v433 = vunpack.c.l.b16 %v132
    %v434 = vunpack.c.h.b16 %v132
    %v435 = vunpack.c.l.b16 %v133
    %v436 = vunpack.c.h.b16 %v133
    %v437 = vunpack.c.l.b16 %v134
    %v438 = vunpack.c.h.b16 %v134
    %v439 = vunpack.c.l.b16 %v135
    %v440 = vunpack.c.h.b16 %v135
    %v441 = vunpack.c.l.b16 %v136
    %v442 = vunpack.c.h.b16 %v136
    %v443 = vunpack.c.l.b16 %v137
    %v444 = vunpack.c.h.b16 %v137
    %v445 = vunpack.c.l.b16 %v138
    %v446 = vunpack.c.h.b16 %v138
    %v447 = vunpack.c.l.b16 %v139
    %v448 = vunpack.c.h.b16 %v139
    %v449 = vunpack.c.l.b16 %v140
    %v450 = vunpack.c.h.b16 %v140
    %v451 = vunpack.c.l.b16 %v141
    %v452 = vunpack.c.h.b16 %v141
    %v453 = vunpack.c.l.b16 %v142
    %v454 = vunpack.c.h.b16 %v142
    %v455 = vunpack.c.l.b16 %v143
    %v456 = vunpack.c.h.b16 %v143
    %v457 = vunpack.c.l.b16 %v144
    %v458 = vunpack.c.h.b16 %v144
    %v459 = vunpack.c.l.b16 %v145
    %v460 = vunpack.c.h.b16 %v145
    %v461 = vunpack.c.l.b16 %v146
    %v462 = vunpack.c.h.b16 %v146
    %v463 = vunpack.c.l.b16 %v147
    %v464 = vunpack.c.h.b16 %v147
    %v465 = vunpack.c.l.b16 %v148
    %v466 = vunpack.c.h.b16 %v148
    %v467 = vunpack.c.l.b16 %v149
    %v468 = vunpack.c.h.b16 %v149
    %v469 = vunpack.c.l.b16 %v150
    %v470 = vunpack.c.h.b16 %v150
    %v471 = vunpack.c.l.b16 %v151
    %v472 = vunpack.c.h.b16 %v151
    %v473 = vunpack.c.l.b16 %v152
    %v474 = vunpack.c.h.b16 %v152
    %v475 = vunpack.c.l.b16 %v153
    %v476 = vunpack.c.h.b16 %v153
    %v477 = vunpack.c.l.b16 %v154
    %v478 = vunpack.c.h.b16 %v154
    %v479 = vunpack.c.l.b16 %v155
    %v480 = vunpack.c.h.b16 %v155
    %v481 = vunpack.c.l.b16 %v156
    %v482 = vunpack.c.h.b16 %v156
    %v483 = vunpack.c.l.b16 %v157
    %v484 = vunpack.c.h.b16 %v157
    %v485 = vunpack.c.l.b16 %v158
    %v486 = vunpack.c.h.b16 %v158
    %v487 = vunpack.c.l.b16 %v159
    %v488 = vunpack.c.h.b16 %v159
    %v489 = vunpack.c.l.b16 %v160
    %v490 = vunpack.c.h.b16 %v160
    %v491 = vunpack.c.l.b16 %v161
    %v492 = vunpack.c.h.b16 %v161
    %v493 = vunpack.c.l.b16 %v162
    %v494 = vunpack.c.h.b16 %v162
    %v495 = vunpack.c.l.b16 %v163
    %v496 = vunpack.c.h.b16 %v163
    %v497 = vunpack.c.l.b16 %v164
    %v498 = vunpack.c.h.b16 %v164
    %v499 = vunpack.c.l.b16 %v165
    %v500 = vunpack.c.h.b16 %v165
    %v501 = vunpack.c.l.b16 %v166
    %v502 = vunpack.c.h.b16 %v166
    %v503 = vunpack.c.l.b16 %v167
    %v504 = vunpack.c.h.b16 %v167
    %v505 = vunpack.c.l.b16 %v168
    %v506 = vunpack.c.h.b16 %v168
    %v507 = vunpack.c.l.b16 %v169
    %v508 = vunpack.c.h.b16 %v169
    %v509 = vunpack.c.l.b16 %v170
    %v510 = vunpack.c.h.b16 %v170
    %v511 = vunpack.c.l.b16 %v171
    %v512 = vunpack.c.h.b16 %v171
    %v513 = vunpack.c.l.b16 %v172
    %v514 = vunpack.c.h.b16 %v172
    %v515 = vunpack.c.l.b16 %v173
    %v516 = vunpack.c.h.b16 %v173
    %v517 = vunpack.c.l.b16 %v174
    %v518 = vunpack.c.h.b16 %v174
    %v519 = vunpack.c.l.b16 %v175
    %v520 = vunpack.c.h.b16 %v175
    %v521 = vunpack.c.l.b16 %v176
    %v522 = vunpack.c.h.b16 %v176
    %v523 = vunpack.c.l.b16 %v177
    %v524 = vunpack.c.h.b16 %v177
    %v525 = vunpack.c.l.b16 %v178
    %v526 = vunpack.c.h.b16 %v178
    %v527 = vunpack.c.l.b16 %v179
    %v528 = vunpack.c.h.b16 %v179
    %v529 = vunpack.c.l.b16 %v180
    %v530 = vunpack.c.h.b16 %v180
    %v531 = vunpack.c.l.b16 %v181
    %v532 = vunpack.c.h.b16 %v181
    %v533 = vunpack.c.l.b16 %v182
    %v534 = vunpack.c.h.b16 %v182
    %v535 = vunpack.c.l.b16 %v183
    %v536 = vunpack.c.h.b16 %v183
    %v537 = vunpack.c.l.b16 %v184
    %v538 = vunpack.c.h.b16 %v184
    %v539 = vunpack.c.l.b16 %v185
    %v540 = vunpack.c.h.b16 %v185
    %v541 = vunpack.c.l.b16 %v186
    %v542 = vunpack.c.h.b16 %v186
    %v543 = vunpack.c.l.b16 %v187
    %v544 = vunpack.c.h.b16 %v187
    %v545 = vunpack.c.l.b16 %v188
    %v546 = vunpack.c.h.b16 %v188
    %v547 = vunpack.c.l.b16 %v189
    %v548 = vunpack.c.h.b16 %v189
    %v549 = vunpack.c.l.b16 %v190
    %v550 = vunpack.c.h.b16 %v190
    %v551 = vunpack.c.l.b16 %v191
    %v552 = vunpack.c.h.b16 %v191
    %v553 = vunpack.c.l.b16 %v192
    %v554 = vunpack.c.h.b16 %v192
    %v555 = vunpack.c.l.b16 %v193
    %v556 = vunpack.c.h.b16 %v193
    %v557 = vunpack.c.l.b16 %v194
    %v558 = vunpack.c.h.b16 %v194
    %v559 = vunpack.c.l.b16 %v195
    %v560 = vunpack.c.h.b16 %v195
    %v561 = vunpack.c.l.b16 %v196
    %v562 = vunpack.c.h.b16 %v196
    %v563 = vunpack.c.l.b16 %v197
    %v564 = vunpack.c.h.b16 %v197
    %v565 = vunpack.c.l.b16 %v198
    %v566 = vunpack.c.h.b16 %v198
    %v567 = vunpack.c.l.b16 %v199
    %v568 = vunpack.c.h.b16 %v199
    %v569 = vunpack.c.l.b16 %v200
    %v570 = vunpack.c.h.b16 %v200
    %v571 = vunpack.c.l.b16 %v201
    %v572 = vunpack.c.h.b16 %v201
    %v573 = vunpack.c.l.b16 %v202
    %v574 = vunpack.c.h.b16 %v202
    %v575 = vunpack.c.l.b16 %v203
    %v576 = vunpack.c.h.b16 %v203
    %v577 = vunpack.c.l.b16 %v204
    %v578 = vunpack.c.h.b16 %v204
    %v579 = vunpack.c.l.b16 %v205
    %v580 = vunpack.c.h.b16 %v205
    %v581 = vunpack.c.l.b16 %v206
    %v582 = vunpack.c.h.b16 %v206
    %v583 = vunpack.c.l.b16 %v207
    %v584 = vunpack.c.h.b16 %v207
    %v585 = vunpack.c.l.b16 %v208
    %v586 = vunpack.c.h.b16 %v208
    %v587 = vunpack.c.l.b16 %v209
    %v588 = vunpack.c.h.b16 %v209
    %v589 = vunpack.c.l.b16 %v210
    %v590 = vunpack.c.h.b16 %v210
    %v591 = vunpack.c.l.b16 %v211
    %v592 = vunpack.c.h.b16 %v211
    %v593 = vunpack.c.l.b16 %v212
    %v594 = vunpack.c.h.b16 %v212
    %v595 = vunpack.c.l.b16 %v213
    %v596 = vunpack.c.h.b16 %v213
    %v597 = vunpack.c.l.b16 %v214
    %v598 = vunpack.c.h.b16 %v214
    %v599 = vunpack.c.l.b16 %v215
    %v600 = vunpack.c.h.b16 %v215
    %v601 = vunpack.c.l.b16 %v216
    %v602 = vunpack.c.h.b16 %v216
    %v603 = vunpack.c.l.b16 %v217
    %v604 = vunpack.c.h.b16 %v217
    %v605 = vunpack.c.l.b16 %v218
    %v606 = vunpack.c.h.b16 %v218
    %v607 = vunpack.c.l.b16 %v219
    %v608 = vunpack.c.h.b16 %v219
    %v609 = vunpack.c.l.b16 %v220
    %v610 = vunpack.c.h.b16 %v220
    %v611 = vunpack.c.l.b16 %v221
    %v612 = vunpack.c.h.b16 %v221
    %v613 = vunpack.c.l.b16 %v222
    %v614 = vunpack.c.h.b16 %v222
    %v615 = vunpack.c.l.b16 %v223
    %v616 = vunpack.c.h.b16 %v223
    %v617 = vunpack.c.l.b16 %v224
    %v618 = vunpack.c.h.b16 %v224
    %v619 = vunpack.c.l.b16 %v225
    %v620 = vunpack.c.h.b16 %v225
    %v621 = vunpack.c.l.b16 %v226
    %v622 = vunpack.c.h.b16 %v226
    %v623 = vpack.c.b16 %v369, %v367
    %v624 = vpack.c.b16 %v370, %v368
    %v625 = vpack.c.b16 %v373, %v371
    %v626 = vpack.c.b16 %v374, %v372
    %v627 = vpack.c.b16 %v377, %v375
    %v628 = vpack.c.b16 %v378, %v376
    %v629 = vpack.c.b16 %v381, %v379
    %v630 = vpack.c.b16 %v382, %v380
    %v631 = vpack.c.b16 %v385, %v383
    %v632 = vpack.c.b16 %v386, %v384
    %v633 = vpack.c.b16 %v389, %v387
    %v634 = vpack.c.b16 %v390, %v388
    %v635 = vpack.c.b16 %v393, %v391
    %v636 = vpack.c.b16 %v394, %v392
    %v637 = vpack.c.b16 %v397, %v395
    %v638 = vpack.c.b16 %v398, %v396
    %v639 = vpack.c.b16 %v401, %v399
    %v640 = vpack.c.b16 %v402, %v400
    %v641 = vpack.c.b16 %v405, %v403
    %v642 = vpack.c.b16 %v406, %v404
    %v643 = vpack.c.b16 %v409, %v407
    %v644 = vpack.c.b16 %v410, %v408
    %v645 = vpack.c.b16 %v413, %v411
    %v646 = vpack.c.b16 %v414, %v412
    %v647 = vpack.c.b16 %v417, %v415
    %v648 = vpack.c.b16 %v418, %v416
    %v649 = vpack.c.b16 %v421, %v419
    %v650 = vpack.c.b16 %v422, %v420
    %v651 = vpack.c.b16 %v425, %v423
    %v652 = vpack.c.b16 %v426, %v424
    %v653 = vpack.c.b16 %v429, %v427
    %v654 = vpack.c.b16 %v430, %v428
    %v655 = vpack.c.b16 %v433, %v431
    %v656 = vpack.c.b16 %v434, %v432
    %v657 = vpack.c.b16 %v437, %v435
    %v658 = vpack.c.b16 %v438, %v436
    %v659 = vpack.c.b16 %v441, %v439
    %v660 = vpack.c.b16 %v442, %v440
    %v661 = vpack.c.b16 %v445, %v443
    %v662 = vpack.c.b16 %v446, %v444
    %v663 = vpack.c.b16 %v449, %v447
    %v664 = vpack.c.b16 %v450, %v448
    %v665 = vpack.c.b16 %v453, %v451
    %v666 = vpack.c.b16 %v454, %v452
    %v667 = vpack.c.b16 %v457, %v455
    %v668 = vpack.c.b16 %v458, %v456
    %v669 = vpack.c.b16 %v461, %v459
    %v670 = vpack.c.b16 %v462, %v460
    %v671 = vpack.c.b16 %v465, %v463
    %v672 = vpack.c.b16 %v466, %v464
    %v673 = vpack.c.b16 %v469, %v467
    %v674 = vpack.c.b16 %v470, %v468
    %v675 = vpack.c.b16 %v473, %v471
    %v676 = vpack.c.b16 %v474, %v472
    %v677 = vpack.c.b16 %v477, %v475
    %v678 = vpack.c.b16 %v478, %v476
    %v679 = vpack.c.b16 %v481, %v479
    %v680 = vpack.c.b16 %v482, %v480
    %v681 = vpack.c.b16 %v485, %v483
    %v682 = vpack.c.b16 %v486, %v484
    %v683 = vpack.c.b16 %v489, %v487
    %v684 = vpack.c.b16 %v490, %v488
    %v685 = vpack.c.b16 %v493, %v491
    %v686 = vpack.c.b16 %v494, %v492
    %v687 = vpack.c.b16 %v497, %v495
    %v688 = vpack.c.b16 %v498, %v496
    %v689 = vpack.c.b16 %v501, %v499
    %v690 = vpack.c.b16 %v502, %v500
    %v691 = vpack.c.b16 %v505, %v503
    %v692 = vpack.c.b16 %v506, %v504
    %v693 = vpack.c.b16 %v509, %v507
    %v694 = vpack.c.b16 %v510, %v508
    %v695 = vpack.c.b16 %v513, %v511
    %v696 = vpack.c.b16 %v514, %v512
    %v697 = vpack.c.b16 %v517, %v515
    %v698 = vpack.c.b16 %v518, %v516
    %v699 = vpack.c.b16 %v521, %v519
    %v700 = vpack.c.b16 %v522, %v520
    %v701 = vpack.c.b16 %v525, %v523
    %v702 = vpack.c.b16 %v526, %v524
    %v703 = vpack.c.b16 %v529, %v527
    %v704 = vpack.c.b16 %v530, %v528
    %v705 = vpack.c.b16 %v533, %v531
    %v706 = vpack.c.b16 %v534, %v532
    %v707 = vpack.c.b16 %v537, %v535
    %v708 = vpack.c.b16 %v538, %v536
    %v709 = vpack.c.b16 %v541, %v539
    %v710 = vpack.c.b16 %v542, %v540
    %v711 = vpack.c.b16 %v545, %v543
    %v712 = vpack.c.b16 %v546, %v544
    %v713 = vpack.c.b16 %v549, %v547
    %v714 = vpack.c.b16 %v550, %v548
    %v715 = vpack.c.b16 %v553, %v551
    %v716 = vpack.c.b16 %v554, %v552
    %v717 = vpack.c.b16 %v557, %v555
    %v718 = vpack.c.b16 %v558, %v556
    %v719 = vpack.c.b16 %v561, %v559
    %v720 = vpack.c.b16 %v562, %v560
    %v721 = vpack.c.b16 %v565, %v563
    %v722 = vpack.c.b16 %v566, %v564
    %v723 = vpack.c.b16 %v569, %v567
    %v724 = vpack.c.b16 %v570, %v568
    %v725 = vpack.c.b16 %v573, %v571
    %v726 = vpack.c.b16 %v574, %v572
    %v727 = vpack.c.b16 %v577, %v575
    %v728 = vpack.c.b16 %v578, %v576
    %v729 = vpack.c.b16 %v581, %v579
    %v730 = vpack.c.b16 %v582, %v580
    %v731 = vpack.c.b16 %v585, %v583
    %v732 = vpack.c.b16 %v586, %v584
    %v733 = vpack.c.b16 %v589, %v587
    %v734 = vpack.c.b16 %v590, %v588
    %v735 = vpack.c.b16 %v593, %v591
    %v736 = vpack.c.b16 %v594, %v592
    %v737 = vpack.c.b16 %v597, %v595
    %v738 = vpack.c.b16 %v598, %v596
    %v739 = vpack.c.b16 %v601, %v599
    %v740 = vpack.c.b16 %v602, %v600
    %v741 = vpack.c.b16 %v605, %v603
    %v742 = vpack.c.b16 %v606, %v604
    %v743 = vpack.c.b16 %v609, %v607
    %v744 = vpack.c.b16 %v610, %v608
    %v745 = vpack.c.b16 %v613, %v611
    %v746 = vpack.c.b16 %v614, %v612
    %v747 = vpack.c.b16 %v617, %v615
    %v748 = vpack.c.b16 %v618, %v616
    %v749 = vpack.c.b16 %v621, %v619
    %v750 = vpack.c.b16 %v622, %v620
    %879 = vmatprep.subr.bf16.mxu0 %v638
    %880 = vmatpush1.bf16.msra.mxu0 %v637
    %881 = vmatprep.subr.bf16.mxu0 %v636
    %882 = vmatpush1.bf16.msra.mxu0 %v635
    %883 = vmatprep.subr.bf16.mxu0 %v634
    %884 = vmatpush1.bf16.msra.mxu0 %v633
    %885 = vmatprep.subr.bf16.mxu0 %v632
    %886 = vmatpush1.bf16.msra.mxu0 %v631
    %887 = vmatprep.subr.bf16.mxu0 %v630
    %888 = vmatpush1.bf16.msra.mxu0 %v629
    %889 = vmatprep.subr.bf16.mxu0 %v628
    %890 = vmatpush1.bf16.msra.mxu0 %v627
    %891 = vmatprep.subr.bf16.mxu0 %v626
    %892 = vmatpush1.bf16.msra.mxu0 %v625
    %893 = vmatprep.subr.bf16.mxu0 %v624
    %894 = vmatpush1.bf16.msra.mxu0 %v623
    %895 = vmatprep.subr.bf16.mxu0 %v654
    %896 = vmatpush2.bf16.msra.mxu0 %v653
    %897 = vmatprep.subr.bf16.mxu0 %v652
    %898 = vmatpush2.bf16.msra.mxu0 %v651
    %899 = vmatprep.subr.bf16.mxu0 %v650
    %900 = vmatpush2.bf16.msra.mxu0 %v649
    %901 = vmatprep.subr.bf16.mxu0 %v648
    %902 = vmatpush2.bf16.msra.mxu0 %v647
    %903 = vmatprep.subr.bf16.mxu0 %v646
    %904 = vmatpush2.bf16.msra.mxu0 %v645
    %905 = vmatprep.subr.bf16.mxu0 %v644
    %906 = vmatpush2.bf16.msra.mxu0 %v643
    %907 = vmatprep.subr.bf16.mxu0 %v642
    %908 = vmatpush2.bf16.msra.mxu0 %v641
    %909 = vmatprep.subr.bf16.mxu0 %v640
    %910 = vmatpush2.bf16.msra.mxu0 %v639
    %911 = vmatprep.mubr.bf16.mxu0 %v92
    %912 = vmatmul.mubr.bf16.gmra.mxu0 %v91
    %v913 = vpop.f32.mrf.mxu0
    %v914 = vadd.f32 %v232, %v913
    %v915 = vpop.f32.mrf.mxu0
    %v916 = vadd.f32 %v236, %v915
    %v917 = vpop.f32.mrf.mxu0
    %v918 = vpop.f32.mrf.mxu0
    %919 = vdwg.mxu0
    %920 = vmatprep.subr.bf16.mxu0 %v670
    %921 = vmatpush1.bf16.msra.mxu0 %v669
    %922 = vmatprep.subr.bf16.mxu0 %v668
    %923 = vmatpush1.bf16.msra.mxu0 %v667
    %924 = vmatprep.subr.bf16.mxu0 %v666
    %925 = vmatpush1.bf16.msra.mxu0 %v665
    %926 = vmatprep.subr.bf16.mxu0 %v664
    %927 = vmatpush1.bf16.msra.mxu0 %v663
    %928 = vmatprep.subr.bf16.mxu0 %v662
    %929 = vmatpush1.bf16.msra.mxu0 %v661
    %930 = vmatprep.subr.bf16.mxu0 %v660
    %931 = vmatpush1.bf16.msra.mxu0 %v659
    %932 = vmatprep.subr.bf16.mxu0 %v658
    %933 = vmatpush1.bf16.msra.mxu0 %v657
    %934 = vmatprep.subr.bf16.mxu0 %v656
    %935 = vmatpush1.bf16.msra.mxu0 %v655
    %936 = vmatprep.subr.bf16.mxu0 %v686
    %937 = vmatpush2.bf16.msra.mxu0 %v685
    %938 = vmatprep.subr.bf16.mxu0 %v684
    %939 = vmatpush2.bf16.msra.mxu0 %v683
    %940 = vmatprep.subr.bf16.mxu0 %v682
    %941 = vmatpush2.bf16.msra.mxu0 %v681
    %942 = vmatprep.subr.bf16.mxu0 %v680
    %943 = vmatpush2.bf16.msra.mxu0 %v679
    %944 = vmatprep.subr.bf16.mxu0 %v678
    %945 = vmatpush2.bf16.msra.mxu0 %v677
    %946 = vmatprep.subr.bf16.mxu0 %v676
    %947 = vmatpush2.bf16.msra.mxu0 %v675
    %948 = vmatprep.subr.bf16.mxu0 %v674
    %949 = vmatpush2.bf16.msra.mxu0 %v673
    %950 = vmatprep.subr.bf16.mxu0 %v672
    %951 = vmatpush2.bf16.msra.mxu0 %v671
    %952 = vmatprep.mubr.bf16.mxu0 %v94
    %953 = vmatmul.mubr.bf16.gmra.mxu0 %v93
    %v954 = vpop.f32.mrf.mxu0
    %v955 = vadd.f32 %v914, %v954
    %v956 = vpop.f32.mrf.mxu0
    %v957 = vadd.f32 %v916, %v956
    %v958 = vpop.f32.mrf.mxu0
    %v959 = vpop.f32.mrf.mxu0
    %960 = vdwg.mxu0
    %961 = vmatprep.subr.bf16.mxu0 %v702
    %962 = vmatpush1.bf16.msra.mxu0 %v701
    %963 = vmatprep.subr.bf16.mxu0 %v700
    %964 = vmatpush1.bf16.msra.mxu0 %v699
    %965 = vmatprep.subr.bf16.mxu0 %v698
    %966 = vmatpush1.bf16.msra.mxu0 %v697
    %967 = vmatprep.subr.bf16.mxu0 %v696
    %968 = vmatpush1.bf16.msra.mxu0 %v695
    %969 = vmatprep.subr.bf16.mxu0 %v694
    %970 = vmatpush1.bf16.msra.mxu0 %v693
    %971 = vmatprep.subr.bf16.mxu0 %v692
    %972 = vmatpush1.bf16.msra.mxu0 %v691
    %973 = vmatprep.subr.bf16.mxu0 %v690
    %974 = vmatpush1.bf16.msra.mxu0 %v689
    %975 = vmatprep.subr.bf16.mxu0 %v688
    %976 = vmatpush1.bf16.msra.mxu0 %v687
    %977 = vmatprep.subr.bf16.mxu0 %v718
    %978 = vmatpush2.bf16.msra.mxu0 %v717
    %979 = vmatprep.subr.bf16.mxu0 %v716
    %980 = vmatpush2.bf16.msra.mxu0 %v715
    %981 = vmatprep.subr.bf16.mxu0 %v714
    %982 = vmatpush2.bf16.msra.mxu0 %v713
    %983 = vmatprep.subr.bf16.mxu0 %v712
    %984 = vmatpush2.bf16.msra.mxu0 %v711
    %985 = vmatprep.subr.bf16.mxu0 %v710
    %986 = vmatpush2.bf16.msra.mxu0 %v709
    %987 = vmatprep.subr.bf16.mxu0 %v708
    %988 = vmatpush2.bf16.msra.mxu0 %v707
    %989 = vmatprep.subr.bf16.mxu0 %v706
    %990 = vmatpush2.bf16.msra.mxu0 %v705
    %991 = vmatprep.subr.bf16.mxu0 %v704
    %992 = vmatpush2.bf16.msra.mxu0 %v703
    %993 = vmatprep.mubr.bf16.mxu0 %v96
    %994 = vmatmul.mubr.bf16.gmra.mxu0 %v95
    %v995 = vpop.f32.mrf.mxu0
    %v996 = vadd.f32 %v955, %v995
    %v997 = vpop.f32.mrf.mxu0
    %v998 = vadd.f32 %v957, %v997
    %v999 = vpop.f32.mrf.mxu0
    %v1000 = vpop.f32.mrf.mxu0
    %1001 = vdwg.mxu0
    %1002 = vmatprep.subr.bf16.mxu0 %v734
    %1003 = vmatpush1.bf16.msra.mxu0 %v733
    %1004 = vmatprep.subr.bf16.mxu0 %v732
    %1005 = vmatpush1.bf16.msra.mxu0 %v731
    %1006 = vmatprep.subr.bf16.mxu0 %v730
    %1007 = vmatpush1.bf16.msra.mxu0 %v729
    %1008 = vmatprep.subr.bf16.mxu0 %v728
    %1009 = vmatpush1.bf16.msra.mxu0 %v727
    %1010 = vmatprep.subr.bf16.mxu0 %v726
    %1011 = vmatpush1.bf16.msra.mxu0 %v725
    %1012 = vmatprep.subr.bf16.mxu0 %v724
    %1013 = vmatpush1.bf16.msra.mxu0 %v723
    %1014 = vmatprep.subr.bf16.mxu0 %v722
    %1015 = vmatpush1.bf16.msra.mxu0 %v721
    %1016 = vmatprep.subr.bf16.mxu0 %v720
    %1017 = vmatpush1.bf16.msra.mxu0 %v719
    %1018 = vmatprep.subr.bf16.mxu0 %v750
    %1019 = vmatpush2.bf16.msra.mxu0 %v749
    %1020 = vmatprep.subr.bf16.mxu0 %v748
    %1021 = vmatpush2.bf16.msra.mxu0 %v747
    %1022 = vmatprep.subr.bf16.mxu0 %v746
    %1023 = vmatpush2.bf16.msra.mxu0 %v745
    %1024 = vmatprep.subr.bf16.mxu0 %v744
    %1025 = vmatpush2.bf16.msra.mxu0 %v743
    %1026 = vmatprep.subr.bf16.mxu0 %v742
    %1027 = vmatpush2.bf16.msra.mxu0 %v741
    %1028 = vmatprep.subr.bf16.mxu0 %v740
    %1029 = vmatpush2.bf16.msra.mxu0 %v739
    %1030 = vmatprep.subr.bf16.mxu0 %v738
    %1031 = vmatpush2.bf16.msra.mxu0 %v737
    %1032 = vmatprep.subr.bf16.mxu0 %v736
    %1033 = vmatpush2.bf16.msra.mxu0 %v735
    %1034 = vmatprep.mubr.bf16.mxu0 %v98
    %1035 = vmatmul.mubr.bf16.gmra.mxu0 %v97
    %v1036 = vpop.f32.mrf.mxu0
    %v1037 = vadd.f32 %v996, %v1036
    %v1038 = vpop.f32.mrf.mxu0
    %v1039 = vadd.f32 %v998, %v1038
    %v1040 = vpop.f32.mrf.mxu0
    %v1041 = vpop.f32.mrf.mxu0
    %1042 = vdwg.mxu0
    %s1043 = sld [smem:[#allocation2]]
    %v1044 = vstv %s1043
    %v1045 = vmul.f32 %v1044, %v1037
    %s1046 = sld [smem:[#allocation2 + $0x1]]
    %v1047 = vstv %s1046
    %v1048 = vmul.f32 %v1047, %v1037
    %1050 = vrot.lane.b32.xlu0 %v1048, 64
    %v1051 = vpop.permute.xlu0 %1050
    %v1053 = vadd.f32 %v1045, %v1051
    %s1054 = sld [smem:[#allocation2 + $0x2]]
    %v1055 = vstv %s1054
    %v1056 = vmul.f32 %v1055, %v1039
    %v1057 = vadd.f32 %v1053, %v1056
    %v1058 = vlaneseq
    %v1059 = vand.u32 %v1058, 127
    %vm1060 = vcmp.lt.s32.totalorder %v1059, 32
    %s1061 = sld [smem:[#allocation4]]
    %vm1062 = vcmp.lt.s32.totalorder %v1059, 48
    %s1063 = sld [smem:[#allocation4 + $0x1]]
    %v1064 = vstv %s1063
    %v1065 = vsel %vm1062, %v1064, 1.0
    %v1066 = vstv %s1061
    %v1067 = vsel %vm1060, %v1066, %v1065
    %v1068 = vrcp.pop %v1067
    %v1069 = vmul.f32 %v1057, %v1068
    %vm1070 = vcmask 254976
    %v1071 = vsel %vm1070, %v1037, -inf
    %1072 = vmax.xlane.f32.xlu0 %v1071
    %v1073 = vpop.xlane.xlu0 %1072
    %v1074 = vsub.f32 %v1037, %v1073
    %v1075 = vmul.f32 %v1074, 1.442695
    %v1076 = vpow.pop %v1075
    %v1077 = vsel %vm1070, %v1076, 0.0
    %1078 = vadd.xlane.f32.xlu0 %v1077
    %v1079 = vpop.xlane.xlu0 %1078
    %v1080 = vrcp.pop %v1079
    %v1081 = vmul.f32 %v1076, %v1080
    %vm1082 = vcmask 386304
    %v1083 = vsel %vm1082, %v1037, -inf
    %1084 = vmax.xlane.f32.xlu0 %v1083
    %v1085 = vpop.xlane.xlu0 %1084
    %v1086 = vsub.f32 %v1037, %v1085
    %v1087 = vmul.f32 %v1086, 1.442695
    %v1088 = vpow.pop %v1087
    %1090 = vrot.lane.b32.xlu0 %v1088, 96
    %v1091 = vpop.permute.xlu0 %1090
    %vm1093 = vcmask 123904
    %v1094 = vsel %vm1093, %v1091, 0.0
    %1095 = vadd.xlane.f32.xlu0 %v1094
    %v1096 = vpop.xlane.xlu0 %1095
    %v1097 = vrcp.pop %v1096
    %v1098 = vmul.f32 %v1088, %v1097
    %v1099 = vmul.f32 %v1081, 0.33333334
    %v1100 = vadd.f32 %v1099, 0.0
    %v1101 = vmul.f32 %v1098, 0.33333334
    %v1102 = vadd.f32 %v1101, 0.0
    %v1103 = vmax.f32 %v1081, 1e-08
    %v1104 = vmin.f32 %v1103, 1.0
    %v1105 = vlog2.pop %v1104
    %v1106 = vmul.f32 %v1105, 0.6931472
    %v1107 = vmul.f32 %v1104, %v1106
    %v1108 = vsel %vm1070, %v1107, 0.0
    %1109 = vadd.xlane.f32.xlu0 %v1108
    %v1110 = vpop.xlane.xlu0 %1109
    %v1111 = vsub.f32 0.0, %v1110
    %v1112 = vmul.f32 %v1111, 0.33333334
    %v1113 = vadd.f32 %v1112, 0.0
    %v1114 = vmax.f32 %v1098, 1e-08
    %v1115 = vmin.f32 %v1114, 1.0
    %v1116 = vlog2.pop %v1115
    %v1117 = vmul.f32 %v1116, 0.6931472
    %v1118 = vmul.f32 %v1115, %v1117
    %1120 = vrot.lane.b32.xlu0 %v1118, 96
    %v1121 = vpop.permute.xlu0 %1120
    %v1123 = vsel %vm1093, %v1121, 0.0
    %1124 = vadd.xlane.f32.xlu0 %v1123
    %v1125 = vpop.xlane.xlu0 %1124
    %v1126 = vsub.f32 0.0, %v1125
    %v1127 = vmul.f32 %v1126, 0.33333334
    %v1128 = vadd.f32 %v1127, 0.0
    %v1129 = vsel %vm1070, %v1081, -inf
    %1130 = vmax.xlane.f32.xlu0 %v1129
    %v1131 = vpop.xlane.xlu0 %1130
    %vm1132 = vcmask 1041408
    %v1133 = vsel %vm1132, %v1131, 0.0
    %v1134 = vrot.slane %v1133, 4
    %v1135 = vadd.f32 %v1133, %v1134
    %v1136 = vrot.slane %v1135, 2
    %v1137 = vadd.f32 %v1135, %v1136
    %v1138 = vrot.slane %v1137, 1
    %v1139 = vadd.f32 %v1137, %v1138
    %v1140 = vrcp.pop 2.0
    %v1141 = vmul.f32 %v1139, %v1140
    %vm1142 = vcmask 779776
    %v1143 = vsel %vm1142, %v1037, -inf
    %1144 = vmax.xlane.f32.xlu0 %v1143
    %v1145 = vpop.xlane.xlu0 %1144
    %v1146 = vsub.f32 %v1037, %v1145
    %v1147 = vmul.f32 %v1146, 1.442695
    %v1148 = vpow.pop %v1147
    %1150 = vrot.lane.b32.xlu0 %v1148, 64
    %v1151 = vpop.permute.xlu0 %1150
    %v1153 = vsel %vm1070, %v1151, 0.0
    %1154 = vadd.xlane.f32.xlu0 %v1153
    %v1155 = vpop.xlane.xlu0 %1154
    %v1156 = vrcp.pop %v1155
    %v1157 = vmul.f32 %v1148, %v1156
    %vm1158 = vcmask 911104
    %v1159 = vsel %vm1158, %v1037, -inf
    %1160 = vmax.xlane.f32.xlu0 %v1159
    %v1161 = vpop.xlane.xlu0 %1160
    %v1162 = vsub.f32 %v1037, %v1161
    %v1163 = vmul.f32 %v1162, 1.442695
    %v1164 = vpow.pop %v1163
    %1166 = vrot.lane.b32.xlu0 %v1164, 32
    %v1167 = vpop.permute.xlu0 %1166
    %v1169 = vsel %vm1093, %v1167, 0.0
    %1170 = vadd.xlane.f32.xlu0 %v1169
    %v1171 = vpop.xlane.xlu0 %1170
    %v1172 = vrcp.pop %v1171
    %v1173 = vmul.f32 %v1164, %v1172
    %v1174 = vmul.f32 %v1157, 0.33333334
    %1176 = vrot.lane.b32.xlu0 %v1174, 64
    %v1177 = vpop.permute.xlu0 %1176
    %v1179 = vadd.f32 %v1100, %v1177
    %v1180 = vmul.f32 %v1173, 0.33333334
    %1182 = vrot.lane.b32.xlu0 %v1180, 64
    %v1183 = vpop.permute.xlu0 %1182
    %v1185 = vadd.f32 %v1102, %v1183
    %v1186 = vmax.f32 %v1157, 1e-08
    %v1187 = vmin.f32 %v1186, 1.0
    %v1188 = vlog2.pop %v1187
    %v1189 = vmul.f32 %v1188, 0.6931472
    %v1190 = vmul.f32 %v1187, %v1189
    %1192 = vrot.lane.b32.xlu0 %v1190, 64
    %v1193 = vpop.permute.xlu0 %1192
    %v1195 = vsel %vm1070, %v1193, 0.0
    %1196 = vadd.xlane.f32.xlu0 %v1195
    %v1197 = vpop.xlane.xlu0 %1196
    %v1198 = vsub.f32 0.0, %v1197
    %v1199 = vmul.f32 %v1198, 0.33333334
    %v1200 = vadd.f32 %v1113, %v1199
    %v1201 = vmax.f32 %v1173, 1e-08
    %v1202 = vmin.f32 %v1201, 1.0
    %v1203 = vlog2.pop %v1202
    %v1204 = vmul.f32 %v1203, 0.6931472
    %v1205 = vmul.f32 %v1202, %v1204
    %1207 = vrot.lane.b32.xlu0 %v1205, 32
    %v1208 = vpop.permute.xlu0 %1207
    %v1210 = vsel %vm1093, %v1208, 0.0
    %1211 = vadd.xlane.f32.xlu0 %v1210
    %v1212 = vpop.xlane.xlu0 %1211
    %v1213 = vsub.f32 0.0, %v1212
    %v1214 = vmul.f32 %v1213, 0.33333334
    %v1215 = vadd.f32 %v1128, %v1214
    %v1216 = vsel %vm1142, %v1157, -inf
    %1217 = vmax.xlane.f32.xlu0 %v1216
    %v1218 = vpop.xlane.xlu0 %1217
    %v1219 = vsel %vm1132, %v1218, 0.0
    %v1220 = vrot.slane %v1219, 4
    %v1221 = vadd.f32 %v1219, %v1220
    %v1222 = vrot.slane %v1221, 2
    %v1223 = vadd.f32 %v1221, %v1222
    %v1224 = vrot.slane %v1223, 1
    %v1225 = vadd.f32 %v1223, %v1224
    %v1226 = vmul.f32 %v1225, %v1140
    %v1227 = vsel %vm1070, %v1039, -inf
    %1228 = vmax.xlane.f32.xlu0 %v1227
    %v1229 = vpop.xlane.xlu0 %1228
    %v1230 = vsub.f32 %v1039, %v1229
    %v1231 = vmul.f32 %v1230, 1.442695
    %v1232 = vpow.pop %v1231
    %v1233 = vsel %vm1070, %v1232, 0.0
    %1234 = vadd.xlane.f32.xlu0 %v1233
    %v1235 = vpop.xlane.xlu0 %1234
    %v1236 = vrcp.pop %v1235
    %v1237 = vmul.f32 %v1232, %v1236
    %v1238 = vsel %vm1082, %v1039, -inf
    %1239 = vmax.xlane.f32.xlu0 %v1238
    %v1240 = vpop.xlane.xlu0 %1239
    %v1241 = vsub.f32 %v1039, %v1240
    %v1242 = vmul.f32 %v1241, 1.442695
    %v1243 = vpow.pop %v1242
    %1245 = vrot.lane.b32.xlu0 %v1243, 96
    %v1246 = vpop.permute.xlu0 %1245
    %v1248 = vsel %vm1093, %v1246, 0.0
    %1249 = vadd.xlane.f32.xlu0 %v1248
    %v1250 = vpop.xlane.xlu0 %1249
    %v1251 = vrcp.pop %v1250
    %v1252 = vmul.f32 %v1243, %v1251
    %v1253 = vmul.f32 %v1237, 0.33333334
    %v1254 = vadd.f32 %v1179, %v1253
    %v1255 = vmul.f32 %v1252, 0.33333334
    %v1256 = vadd.f32 %v1185, %v1255
    %v1257 = vmax.f32 %v1237, 1e-08
    %v1258 = vmin.f32 %v1257, 1.0
    %v1259 = vlog2.pop %v1258
    %v1260 = vmul.f32 %v1259, 0.6931472
    %v1261 = vmul.f32 %v1258, %v1260
    %v1262 = vsel %vm1070, %v1261, 0.0
    %1263 = vadd.xlane.f32.xlu0 %v1262
    %v1264 = vpop.xlane.xlu0 %1263
    %v1265 = vsub.f32 0.0, %v1264
    %v1266 = vmul.f32 %v1265, 0.33333334
    %v1267 = vadd.f32 %v1200, %v1266
    %v1268 = vmax.f32 %v1252, 1e-08
    %v1269 = vmin.f32 %v1268, 1.0
    %v1270 = vlog2.pop %v1269
    %v1271 = vmul.f32 %v1270, 0.6931472
    %v1272 = vmul.f32 %v1269, %v1271
    %1274 = vrot.lane.b32.xlu0 %v1272, 96
    %v1275 = vpop.permute.xlu0 %1274
    %v1277 = vsel %vm1093, %v1275, 0.0
    %1278 = vadd.xlane.f32.xlu0 %v1277
    %v1279 = vpop.xlane.xlu0 %1278
    %v1280 = vsub.f32 0.0, %v1279
    %v1281 = vmul.f32 %v1280, 0.33333334
    %v1282 = vadd.f32 %v1215, %v1281
    %v1283 = vsel %vm1070, %v1237, -inf
    %1284 = vmax.xlane.f32.xlu0 %v1283
    %v1285 = vpop.xlane.xlu0 %1284
    %v1286 = vsel %vm1132, %v1285, 0.0
    %v1287 = vrot.slane %v1286, 4
    %v1288 = vadd.f32 %v1286, %v1287
    %v1289 = vrot.slane %v1288, 2
    %v1290 = vadd.f32 %v1288, %v1289
    %v1291 = vrot.slane %v1290, 1
    %v1292 = vadd.f32 %v1290, %v1291
    %v1293 = vmul.f32 %v1292, %v1140
    %v1294 = vmax.f32 %v1254, 1e-08
    %v1295 = vmin.f32 %v1294, 1.0
    %v1296 = vlog2.pop %v1295
    %v1297 = vmul.f32 %v1296, 0.6931472
    %v1298 = vmul.f32 %v1295, %v1297
    %v1299 = vsel %vm1070, %v1298, 0.0
    %1300 = vadd.xlane.f32.xlu0 %v1299
    %v1301 = vpop.xlane.xlu0 %1300
    %v1302 = vsub.f32 0.0, %v1301
    %v1303 = vsub.f32 %v1302, %v1267
    %v1304 = vmax.f32 %v1256, 1e-08
    %v1305 = vmin.f32 %v1304, 1.0
    %v1306 = vlog2.pop %v1305
    %v1307 = vmul.f32 %v1306, 0.6931472
    %v1308 = vmul.f32 %v1305, %v1307
    %1310 = vrot.lane.b32.xlu0 %v1308, 96
    %v1311 = vpop.permute.xlu0 %1310
    %v1313 = vsel %vm1093, %v1311, 0.0
    %1314 = vadd.xlane.f32.xlu0 %v1313
    %v1315 = vpop.xlane.xlu0 %1314
    %v1316 = vsub.f32 0.0, %v1315
    %v1317 = vsub.f32 %v1316, %v1282
    %v1318 = vsel %vm1132, %v1303, 0.0
    %v1319 = vrot.slane %v1318, 4
    %v1320 = vadd.f32 %v1318, %v1319
    %v1321 = vrot.slane %v1320, 2
    %v1322 = vadd.f32 %v1320, %v1321
    %v1323 = vrot.slane %v1322, 1
    %v1324 = vadd.f32 %v1322, %v1323
    %v1325 = vmul.f32 %v1324, %v1140
    %v1326 = vsel %vm1132, %v1317, 0.0
    %v1327 = vrot.slane %v1326, 4
    %v1328 = vadd.f32 %v1326, %v1327
    %v1329 = vrot.slane %v1328, 2
    %v1330 = vadd.f32 %v1328, %v1329
    %v1331 = vrot.slane %v1330, 1
    %v1332 = vadd.f32 %v1330, %v1331
    %v1333 = vmul.f32 %v1332, %v1140
    %1335 = vrot.lane.b32.xlu0 %v1037, 64
    %v1336 = vpop.permute.xlu0 %1335
    %v1338 = vadd.f32 %v1037, %v1336
    %v1339 = vadd.f32 %v1338, %v1039
    %v1340 = vmul.f32 %v1339, 0.33333334
    %v1341 = vsub.f32 %v1037, %v1340
    %v1342 = vmul.f32 %v1341, %v1341
    %v1343 = vadd.f32 %v1342, 0.0
    %1345 = vrot.lane.b32.xlu0 %v1340, 64
    %v1346 = vpop.permute.xlu0 %1345
    %v1348 = vsub.f32 %v1037, %v1346
    %v1349 = vmul.f32 %v1348, %v1348
    %1351 = vrot.lane.b32.xlu0 %v1349, 64
    %v1352 = vpop.permute.xlu0 %1351
    %v1354 = vadd.f32 %v1343, %v1352
    %v1355 = vsub.f32 %v1039, %v1340
    %v1356 = vmul.f32 %v1355, %v1355
    %v1357 = vadd.f32 %v1354, %v1356
    %v1358 = vmul.f32 %v1357, 0.5
    %1360 = vrot.lane.b32.xlu0 %v1358, 80
    %v1361 = vpop.permute.xlu0 %1360
    %vm1363 = vcmask 58368
    %v1364 = vsel %vm1363, %v1361, 0.0
    %1365 = vadd.xlane.f32.xlu0 %v1364
    %v1366 = vpop.xlane.xlu0 %1365
    %v1367 = vrcp.pop 8.0
    %v1368 = vmul.f32 %v1366, %v1367
    %v1369 = vsel %vm1132, %v1368, 0.0
    %v1370 = vrot.slane %v1369, 4
    %v1371 = vadd.f32 %v1369, %v1370
    %v1372 = vrot.slane %v1371, 2
    %v1373 = vadd.f32 %v1371, %v1372
    %v1374 = vrot.slane %v1373, 1
    %v1375 = vadd.f32 %v1373, %v1374
    %v1376 = vmul.f32 %v1375, %v1140
    %v1377 = vmax.f32 %v1141, %v1226
    %v1378 = vmax.f32 %v1377, %v1293
    %v1379 = vadd.f32 %v1141, %v1226
    %v1380 = vadd.f32 %v1379, %v1293
    %v1381 = vmul.f32 %v1380, 0.33333334
    %v1382 = vsub.f32 %v1141, %v1381
    %v1383 = vmul.f32 %v1382, %v1382
    %v1384 = vsub.f32 %v1226, %v1381
    %v1385 = vmul.f32 %v1384, %v1384
    %v1386 = vadd.f32 %v1383, %v1385
    %v1387 = vsub.f32 %v1293, %v1381
    %v1388 = vmul.f32 %v1387, %v1387
    %v1389 = vadd.f32 %v1386, %v1388
    %v1390 = vmul.f32 %v1389, 0.33333334
    %v1391 = vrsqrt.pop %v1390
    %v1392 = vmul.f32 %v1390, %v1391
    %vm1393 = vcmp.eq.f32.partialorder %v1390, inf
    %v1394 = vsel %vm1393, %v1390, %v1392
    %vm1395 = vcmp.eq.f32.partialorder %v1390, 0.0
    %v1396 = vand.u32 %v1390, 2147483648
    %v1397 = vsel %vm1395, %v1396, %v1394
    %vm1398 = vcmp.eq.s32.totalorder %v1059, 56
    %v1399 = vsel %vm1398, %v1325, %v1069
    %vm1400 = vcmp.eq.s32.totalorder %v1059, 57
    %v1401 = vsel %vm1400, %v1333, %v1399
    %vm1402 = vcmp.eq.s32.totalorder %v1059, 58
    %v1403 = vsel %vm1402, %v1376, %v1401
    %vm1404 = vcmp.eq.s32.totalorder %v1059, 59
    %v1405 = vsel %vm1404, %v1141, %v1403
    %vm1406 = vcmp.eq.s32.totalorder %v1059, 60
    %v1407 = vsel %vm1406, %v1226, %v1405
    %vm1408 = vcmp.eq.s32.totalorder %v1059, 61
    %v1409 = vsel %vm1408, %v1293, %v1407
    %vm1410 = vcmp.eq.s32.totalorder %v1059, 62
    %v1411 = vsel %vm1410, %v1378, %v1409
    %vm1412 = vcmp.eq.s32.totalorder %v1059, 63
    %v1413 = vsel %vm1412, %v1397, %v1411
    %vm1414 = vcmask 523264
    %v1415 = vsel %vm1414, %v1413, 0.0
    %1416 = vst [vmem:[%s5] sm:$0x3] %v1415
    // Predicated region
    $region30: #{_forward_device.1} parent=1 // pred_check
      _
    $region31: #{_forward_device.1} parent=1 // pred_check_branch
      %1418 = sbr.rel (0) target = $region33
    $region32: #{_forward_device.1} parent=1 // pred_region
      _
    $region33: #{_forward_device.1} parent=1 // pred_fallthru
      _
    // Predicated region
    $region34: #{_forward_device.1} parent=1 // pred_check
      _
    $region35: #{_forward_device.1} parent=1 // pred_check_branch
      %1420 = sbr.rel (0) target = $region37
    $region36: #{_forward_device.1} parent=1 // pred_region
      _
    $region37: #{_forward_device.1} parent=1 // pred_fallthru
      _
    %1421 = vsyncpa [#allocation3], 1
    %1422 = vsyncpa [#allocation5], 1

</llo_original>
